<compile_context>
chip_gen: v7x
topology: tpu7x:2x2x1
jax: 0.10.0
libtpu: 0.0.40
codegen_flags: <defaults>
</compile_context>

<pallas_src>
import functools

import jax
import jax.numpy as jnp
from jax.experimental import pallas as pl
from jax.experimental.pallas import tpu as pltpu


# ----------------------------- Pallas kernel -------------------------------

def _gactor_fused_kernel(a_ref, x_ref, w_ref, b_ref, o_ref, *, num_layers):
    """Fused GActor forward: h_{l+1} = relu(A_hat @ (h_l @ W_l) + b_l).

    a_ref: (M, M)    block-diagonal normalized adjacency, bf16 (MXU-ready)
    x_ref: (M, K)    K-padded node features for this batch tile, f32
    w_ref: (L, K, K) K-padded weight stack, bf16
    b_ref: (L, 1, K) K-padded bias stack, f32
    o_ref: (M, K)    K-padded output (only col 0 is real), f32
    """
    a = a_ref[...]                            # bf16, cast done once in wrapper
    h = x_ref[...]                            # f32 running activation (VMEM/vregs)
    for l in range(num_layers):               # static unroll over the 5 layers
        xw = jnp.dot(h.astype(jnp.bfloat16), w_ref[l],
                     preferred_element_type=jnp.float32)
        out = jnp.dot(a, xw.astype(jnp.bfloat16),
                      preferred_element_type=jnp.float32)
        out = out + b_ref[l]                   # f32 epilogue (v5e-friendly)
        if l < num_layers - 1:
            out = jnp.maximum(out, 0.0)
        h = out
    o_ref[...] = h


def gactor_forward_fused(a_bd_bf16, x_pad, w_stack, b_stack):
    """One pallas_call over batch tiles; everything per-tile fits VMEM."""
    m_total, k_pad = x_pad.shape
    m_tile = a_bd_bf16.shape[0]
    assert m_total % m_tile == 0, "batch rows must be a multiple of the A tile"
    num_layers = w_stack.shape[0]
    kernel = functools.partial(_gactor_fused_kernel, num_layers=num_layers)
    return pl.pallas_call(
        kernel,
        out_shape=jax.ShapeDtypeStruct((m_total, k_pad), jnp.float32),
        grid=(m_total // m_tile,),
        in_specs=[
            pl.BlockSpec(a_bd_bf16.shape, lambda g: (0, 0)),   # shared A tile
            pl.BlockSpec((m_tile, k_pad), lambda g: (g, 0)),
            pl.BlockSpec(w_stack.shape, lambda g: (0, 0, 0)),  # shared weights
            pl.BlockSpec(b_stack.shape, lambda g: (0, 0, 0)),  # shared biases
        ],
        out_specs=pl.BlockSpec((m_tile, k_pad), lambda g: (g, 0)),
        compiler_params=pltpu.CompilerParams(
            dimension_semantics=("parallel",)),                 # v7x: 2-TC shard
    )(a_bd_bf16, x_pad, w_stack, b_stack)


# ------------------------------ GActor model -------------------------------

def _round_up(v, m):
    return ((v + m - 1) // m) * m


def init_gactor_params(key, state_size, hidden_channels, nb_hidden_layers=3):
    """Glorot-ish init; shapes match the PyTorch GActor module."""
    def glorot(k, fan_in, fan_out):
        scale = jnp.sqrt(6.0 / (fan_in + fan_out))
        return jax.random.uniform(k, (fan_in, fan_out), jnp.float32,
                                  -scale, scale)

    keys = jax.random.split(key, nb_hidden_layers + 2)
    params = []
    # global_conv1: state_size -> hidden_channels
    params.append((glorot(keys[0], state_size, hidden_channels),
                   jnp.zeros((hidden_channels,), jnp.float32)))
    # global_conv2: hidden_channels -> hidden_channels (x nb_hidden_layers)
    for i in range(nb_hidden_layers):
        params.append((glorot(keys[1 + i], hidden_channels, hidden_channels),
                       jnp.zeros((hidden_channels,), jnp.float32)))
    # global_conv3: hidden_channels -> 1
    params.append((glorot(keys[-1], hidden_channels, 1),
                   jnp.zeros((1,), jnp.float32)))
    return params


def pack_params(params):
    """One-time packing: stack weights/biases into slim K-padded slabs.

    K_pad = max fan-in/out rounded to a sublane multiple (32 here), so the
    slabs carry almost no padded zeros (vs the old 128-wide padding).
    Padded rows/cols stay exactly 0 through every layer (zero weights/bias,
    ReLU(0)=0), so they never leak into real columns.
    """
    k_pad = _round_up(max(max(w.shape) for w, _ in params), 8)
    num_layers = len(params)
    w_stack = jnp.zeros((num_layers, k_pad, k_pad), jnp.float32)
    b_stack = jnp.zeros((num_layers, 1, k_pad), jnp.float32)
    for l, (w, b) in enumerate(params):
        f_in, f_out = w.shape
        w_stack = w_stack.at[l, :f_in, :f_out].set(w)
        b_stack = b_stack.at[l, 0, :f_out].set(b)
    return w_stack.astype(jnp.bfloat16), b_stack, k_pad


def build_block_diag_adjacency(a_hat, graphs_per_tile):
    """I_Bg (x) A_hat, pre-cast to bf16 — built once, reused every forward."""
    eye = jnp.eye(graphs_per_tile, dtype=jnp.float32)
    return jnp.kron(eye, a_hat).astype(jnp.bfloat16)


@functools.partial(jax.jit, static_argnames=("f_out",))
def gactor_forward_batched(w_stack, b_stack, a_bd_bf16, x_batch, *, f_out=1):
    """Batched GActor.forward over B timesteps sharing one graph.

    x_batch: (B, N, state_size) -> returns (B, N, f_out).
    """
    bsz, n_nodes, feat = x_batch.shape
    k_pad = w_stack.shape[1]
    x_flat = x_batch.reshape(bsz * n_nodes, feat)
    x_pad = jnp.pad(x_flat, ((0, 0), (0, k_pad - feat)))
    out_pad = gactor_forward_fused(a_bd_bf16, x_pad, w_stack, b_stack)
    return out_pad[:, :f_out].reshape(bsz, n_nodes, f_out)


# ----------------------------- graph glue (JAX) -----------------------------

def normalized_adjacency(edge_index, num_nodes):
    """Dense D^-1/2 (A + I) D^-1/2 like GCNConv's gcn_norm (edge weights = 1)."""
    src, dst = edge_index[0], edge_index[1]
    a = jnp.zeros((num_nodes, num_nodes), jnp.float32)
    a = a.at[dst, src].add(1.0)                    # source_to_target flow
    a = a + jnp.eye(num_nodes, dtype=jnp.float32)  # self loops
    deg = a.sum(axis=1)
    dinv = jnp.where(deg > 0, 1.0 / jnp.sqrt(deg), 0.0)
    return dinv[:, None] * a * dinv[None, :]


# --------------------------------- main -------------------------------------

if __name__ == "__main__":
    key = jax.random.PRNGKey(0)
    k_feat, k_param = jax.random.split(key)

    # Small synthetic graph: 16 nodes, ring + a few chords (undirected).
    num_nodes = 16
    state_size = 8
    hidden_channels = 32
    nb_hidden_layers = 3

    # Batch of RL timesteps sharing this graph (node features vary per step).
    graphs_per_tile = 16          # 16 graphs * 16 nodes = 256-row MXU tile
    batch = 32                    # -> grid of 2 "parallel" batch tiles

    ring_src = list(range(num_nodes))
    ring_dst = [(i + 1) % num_nodes for i in range(num_nodes)]
    chord_src = [0, 3, 5, 7]
    chord_dst = [8, 11, 13, 15]
    src = ring_src + chord_src
    dst = ring_dst + chord_dst
    edge_index = jnp.array([src + dst, dst + src], dtype=jnp.int32)  # both dirs

    a_hat = normalized_adjacency(edge_index, num_nodes)
    params = init_gactor_params(k_param, state_size, hidden_channels,
                                nb_hidden_layers)

    # ---- one-time (hoisted) setup: packed slabs + block-diag bf16 A_hat ----
    w_stack, b_stack, _ = pack_params(params)
    a_bd = build_block_diag_adjacency(a_hat, graphs_per_tile)

    x_batch = jax.random.normal(k_feat, (batch, num_nodes, state_size),
                                jnp.float32)

    out = gactor_forward_batched(w_stack, b_stack, a_bd, x_batch, f_out=1)
    out = jax.block_until_ready(out)

    # Pure-JAX f32 reference (GCNConv semantics) for a sanity check.
    def ref_forward(params, x, a_hat):
        h = x
        for i, (w, b) in enumerate(params):
            h = a_hat @ (h @ w) + b[None, :]
            if i < len(params) - 1:
                h = jnp.maximum(h, 0.0)
        return h

    ref = jax.vmap(lambda xb: ref_forward(params, xb, a_hat))(x_batch)

    assert out.shape == (batch, num_nodes, 1)
    assert bool(jnp.all(jnp.isfinite(out)))
    rel_err = jnp.max(jnp.abs(out - ref)) / (jnp.max(jnp.abs(ref)) + 1e-6)
    # bf16 MXU inputs with f32 accumulation over 5 layers -> ~1e-3..1e-2 rel err.
    assert float(rel_err) < 0.05, f"mismatch vs reference: rel_err={rel_err}"
    print("KERNEL_OK")
</pallas_src>

<mosaic_0001>
module attributes {stable_mosaic.version = 11 : i64} {
  func.func @_gactor_fused_kernel(%arg0: i32, %arg1: memref<256x256xbf16, #tpu.memory_space<vmem>>, %arg2: memref<256x32xf32, #tpu.memory_space<vmem>>, %arg3: memref<5x32x32xbf16, #tpu.memory_space<vmem>>, %arg4: memref<5x1x32xf32, #tpu.memory_space<vmem>>, %arg5: memref<256x32xf32, #tpu.memory_space<vmem>>) attributes {dimension_semantics = [#tpu.dimension_semantics<parallel>], iteration_bounds = array<i64: 2>, scalar_prefetch = 0 : i64, scratch_operands = 0 : i64, tpu.core_type = #tpu.core_type<tc>, window_params = [{pipeline_mode = #tpu.pipeline_mode<synchronous>, transform_indices = @transform_0, window_bounds = array<i64: 256, 256>}, {transform_indices = @transform_1, window_bounds = array<i64: 256, 32>}, {pipeline_mode = #tpu.pipeline_mode<synchronous>, transform_indices = @transform_2, window_bounds = array<i64: 5, 32, 32>}, {pipeline_mode = #tpu.pipeline_mode<synchronous>, transform_indices = @transform_3, window_bounds = array<i64: 5, 1, 32>}, {transform_indices = @transform_4, window_bounds = array<i64: 256, 32>}]} {
    %c0 = arith.constant 0 : index
    %c0_0 = arith.constant 0 : index
    %0 = vector.load %arg1[%c0, %c0_0] : memref<256x256xbf16, #tpu.memory_space<vmem>>, vector<256x256xbf16>
    %c0_1 = arith.constant 0 : index
    %c0_2 = arith.constant 0 : index
    %1 = vector.load %arg2[%c0_1, %c0_2] : memref<256x32xf32, #tpu.memory_space<vmem>>, vector<256x32xf32>
    %2 = arith.truncf %1 : vector<256x32xf32> to vector<256x32xbf16>
    %c0_3 = arith.constant 0 : index
    %c0_4 = arith.constant 0 : index
    %c0_5 = arith.constant 0 : index
    %3 = vector.load %arg3[%c0_3, %c0_4, %c0_5] : memref<5x32x32xbf16, #tpu.memory_space<vmem>>, vector<1x32x32xbf16>
    %4 = vector.shape_cast %3 : vector<1x32x32xbf16> to vector<32x32xbf16>
    %cst = arith.constant dense<0.000000e+00> : vector<256x32xf32>
    %5 = tpu.matmul %2, %4, %cst {dimension_numbers = #tpu.dot_dimension_numbers<[1], [0], [0], [1], [0, 0, 1, 1], [], []>} : vector<256x32xbf16>, vector<32x32xbf16>, vector<256x32xf32> -> vector<256x32xf32>
    %6 = arith.truncf %5 : vector<256x32xf32> to vector<256x32xbf16>
    %cst_6 = arith.constant dense<0.000000e+00> : vector<256x32xf32>
    %7 = tpu.matmul %0, %6, %cst_6 {dimension_numbers = #tpu.dot_dimension_numbers<[1], [0], [0], [1], [0, 0, 1, 1], [], []>} : vector<256x256xbf16>, vector<256x32xbf16>, vector<256x32xf32> -> vector<256x32xf32>
    %c0_7 = arith.constant 0 : index
    %c0_8 = arith.constant 0 : index
    %c0_9 = arith.constant 0 : index
    %8 = vector.load %arg4[%c0_7, %c0_8, %c0_9] : memref<5x1x32xf32, #tpu.memory_space<vmem>>, vector<1x1x32xf32>
    %9 = vector.shape_cast %8 : vector<1x1x32xf32> to vector<1x32xf32>
    %10 = vector.broadcast %9 : vector<1x32xf32> to vector<256x32xf32>
    %11 = arith.addf %7, %10 : vector<256x32xf32>
    %cst_10 = arith.constant 0.000000e+00 : f32
    %12 = vector.broadcast %cst_10 : f32 to vector<256x32xf32>
    %13 = arith.maximumf %11, %12 : vector<256x32xf32>
    %14 = arith.truncf %13 : vector<256x32xf32> to vector<256x32xbf16>
    %c1 = arith.constant 1 : index
    %c0_11 = arith.constant 0 : index
    %c0_12 = arith.constant 0 : index
    %15 = vector.load %arg3[%c1, %c0_11, %c0_12] : memref<5x32x32xbf16, #tpu.memory_space<vmem>>, vector<1x32x32xbf16>
    %16 = vector.shape_cast %15 : vector<1x32x32xbf16> to vector<32x32xbf16>
    %cst_13 = arith.constant dense<0.000000e+00> : vector<256x32xf32>
    %17 = tpu.matmul %14, %16, %cst_13 {dimension_numbers = #tpu.dot_dimension_numbers<[1], [0], [0], [1], [0, 0, 1, 1], [], []>} : vector<256x32xbf16>, vector<32x32xbf16>, vector<256x32xf32> -> vector<256x32xf32>
    %18 = arith.truncf %17 : vector<256x32xf32> to vector<256x32xbf16>
    %cst_14 = arith.constant dense<0.000000e+00> : vector<256x32xf32>
    %19 = tpu.matmul %0, %18, %cst_14 {dimension_numbers = #tpu.dot_dimension_numbers<[1], [0], [0], [1], [0, 0, 1, 1], [], []>} : vector<256x256xbf16>, vector<256x32xbf16>, vector<256x32xf32> -> vector<256x32xf32>
    %c1_15 = arith.constant 1 : index
    %c0_16 = arith.constant 0 : index
    %c0_17 = arith.constant 0 : index
    %20 = vector.load %arg4[%c1_15, %c0_16, %c0_17] : memref<5x1x32xf32, #tpu.memory_space<vmem>>, vector<1x1x32xf32>
    %21 = vector.shape_cast %20 : vector<1x1x32xf32> to vector<1x32xf32>
    %22 = vector.broadcast %21 : vector<1x32xf32> to vector<256x32xf32>
    %23 = arith.addf %19, %22 : vector<256x32xf32>
    %cst_18 = arith.constant 0.000000e+00 : f32
    %24 = vector.broadcast %cst_18 : f32 to vector<256x32xf32>
    %25 = arith.maximumf %23, %24 : vector<256x32xf32>
    %26 = arith.truncf %25 : vector<256x32xf32> to vector<256x32xbf16>
    %c2 = arith.constant 2 : index
    %c0_19 = arith.constant 0 : index
    %c0_20 = arith.constant 0 : index
    %27 = vector.load %arg3[%c2, %c0_19, %c0_20] : memref<5x32x32xbf16, #tpu.memory_space<vmem>>, vector<1x32x32xbf16>
    %28 = vector.shape_cast %27 : vector<1x32x32xbf16> to vector<32x32xbf16>
    %cst_21 = arith.constant dense<0.000000e+00> : vector<256x32xf32>
    %29 = tpu.matmul %26, %28, %cst_21 {dimension_numbers = #tpu.dot_dimension_numbers<[1], [0], [0], [1], [0, 0, 1, 1], [], []>} : vector<256x32xbf16>, vector<32x32xbf16>, vector<256x32xf32> -> vector<256x32xf32>
    %30 = arith.truncf %29 : vector<256x32xf32> to vector<256x32xbf16>
    %cst_22 = arith.constant dense<0.000000e+00> : vector<256x32xf32>
    %31 = tpu.matmul %0, %30, %cst_22 {dimension_numbers = #tpu.dot_dimension_numbers<[1], [0], [0], [1], [0, 0, 1, 1], [], []>} : vector<256x256xbf16>, vector<256x32xbf16>, vector<256x32xf32> -> vector<256x32xf32>
    %c2_23 = arith.constant 2 : index
    %c0_24 = arith.constant 0 : index
    %c0_25 = arith.constant 0 : index
    %32 = vector.load %arg4[%c2_23, %c0_24, %c0_25] : memref<5x1x32xf32, #tpu.memory_space<vmem>>, vector<1x1x32xf32>
    %33 = vector.shape_cast %32 : vector<1x1x32xf32> to vector<1x32xf32>
    %34 = vector.broadcast %33 : vector<1x32xf32> to vector<256x32xf32>
    %35 = arith.addf %31, %34 : vector<256x32xf32>
    %cst_26 = arith.constant 0.000000e+00 : f32
    %36 = vector.broadcast %cst_26 : f32 to vector<256x32xf32>
    %37 = arith.maximumf %35, %36 : vector<256x32xf32>
    %38 = arith.truncf %37 : vector<256x32xf32> to vector<256x32xbf16>
    %c3 = arith.constant 3 : index
    %c0_27 = arith.constant 0 : index
    %c0_28 = arith.constant 0 : index
    %39 = vector.load %arg3[%c3, %c0_27, %c0_28] : memref<5x32x32xbf16, #tpu.memory_space<vmem>>, vector<1x32x32xbf16>
    %40 = vector.shape_cast %39 : vector<1x32x32xbf16> to vector<32x32xbf16>
    %cst_29 = arith.constant dense<0.000000e+00> : vector<256x32xf32>
    %41 = tpu.matmul %38, %40, %cst_29 {dimension_numbers = #tpu.dot_dimension_numbers<[1], [0], [0], [1], [0, 0, 1, 1], [], []>} : vector<256x32xbf16>, vector<32x32xbf16>, vector<256x32xf32> -> vector<256x32xf32>
    %42 = arith.truncf %41 : vector<256x32xf32> to vector<256x32xbf16>
    %cst_30 = arith.constant dense<0.000000e+00> : vector<256x32xf32>
    %43 = tpu.matmul %0, %42, %cst_30 {dimension_numbers = #tpu.dot_dimension_numbers<[1], [0], [0], [1], [0, 0, 1, 1], [], []>} : vector<256x256xbf16>, vector<256x32xbf16>, vector<256x32xf32> -> vector<256x32xf32>
    %c3_31 = arith.constant 3 : index
    %c0_32 = arith.constant 0 : index
    %c0_33 = arith.constant 0 : index
    %44 = vector.load %arg4[%c3_31, %c0_32, %c0_33] : memref<5x1x32xf32, #tpu.memory_space<vmem>>, vector<1x1x32xf32>
    %45 = vector.shape_cast %44 : vector<1x1x32xf32> to vector<1x32xf32>
    %46 = vector.broadcast %45 : vector<1x32xf32> to vector<256x32xf32>
    %47 = arith.addf %43, %46 : vector<256x32xf32>
    %cst_34 = arith.constant 0.000000e+00 : f32
    %48 = vector.broadcast %cst_34 : f32 to vector<256x32xf32>
    %49 = arith.maximumf %47, %48 : vector<256x32xf32>
    %50 = arith.truncf %49 : vector<256x32xf32> to vector<256x32xbf16>
    %c4 = arith.constant 4 : index
    %c0_35 = arith.constant 0 : index
    %c0_36 = arith.constant 0 : index
    %51 = vector.load %arg3[%c4, %c0_35, %c0_36] : memref<5x32x32xbf16, #tpu.memory_space<vmem>>, vector<1x32x32xbf16>
    %52 = vector.shape_cast %51 : vector<1x32x32xbf16> to vector<32x32xbf16>
    %cst_37 = arith.constant dense<0.000000e+00> : vector<256x32xf32>
    %53 = tpu.matmul %50, %52, %cst_37 {dimension_numbers = #tpu.dot_dimension_numbers<[1], [0], [0], [1], [0, 0, 1, 1], [], []>} : vector<256x32xbf16>, vector<32x32xbf16>, vector<256x32xf32> -> vector<256x32xf32>
    %54 = arith.truncf %53 : vector<256x32xf32> to vector<256x32xbf16>
    %cst_38 = arith.constant dense<0.000000e+00> : vector<256x32xf32>
    %55 = tpu.matmul %0, %54, %cst_38 {dimension_numbers = #tpu.dot_dimension_numbers<[1], [0], [0], [1], [0, 0, 1, 1], [], []>} : vector<256x256xbf16>, vector<256x32xbf16>, vector<256x32xf32> -> vector<256x32xf32>
    %c4_39 = arith.constant 4 : index
    %c0_40 = arith.constant 0 : index
    %c0_41 = arith.constant 0 : index
    %56 = vector.load %arg4[%c4_39, %c0_40, %c0_41] : memref<5x1x32xf32, #tpu.memory_space<vmem>>, vector<1x1x32xf32>
    %57 = vector.shape_cast %56 : vector<1x1x32xf32> to vector<1x32xf32>
    %58 = vector.broadcast %57 : vector<1x32xf32> to vector<256x32xf32>
    %59 = arith.addf %55, %58 : vector<256x32xf32>
    %c0_42 = arith.constant 0 : index
    %c0_43 = arith.constant 0 : index
    %60 = vector.load %arg5[%c0_42, %c0_43] : memref<256x32xf32, #tpu.memory_space<vmem>>, vector<256x32xf32>
    tpu.vector_store %arg5[%c0_42, %c0_43], %59 {strides = array<i32>} : memref<256x32xf32, #tpu.memory_space<vmem>>, vector<256x32xf32>,
    return
  }
  func.func @transform_0(%arg0: i32) -> (i32, i32) {
    %c0_i32 = arith.constant 0 : i32
    %c0_i32_0 = arith.constant 0 : i32
    %c0_i32_1 = arith.constant 0 : i32
    return %c0_i32, %c0_i32_0 : i32, i32
  }
  func.func @transform_1(%arg0: i32) -> (i32, i32) {
    %c0_i32 = arith.constant 0 : i32
    %c0_i32_0 = arith.constant 0 : i32
    return %arg0, %c0_i32 : i32, i32
  }
  func.func @transform_2(%arg0: i32) -> (i32, i32, i32) {
    %c0_i32 = arith.constant 0 : i32
    %c0_i32_0 = arith.constant 0 : i32
    %c0_i32_1 = arith.constant 0 : i32
    %c0_i32_2 = arith.constant 0 : i32
    return %c0_i32, %c0_i32_0, %c0_i32_1 : i32, i32, i32
  }
  func.func @transform_3(%arg0: i32) -> (i32, i32, i32) {
    %c0_i32 = arith.constant 0 : i32
    %c0_i32_0 = arith.constant 0 : i32
    %c0_i32_1 = arith.constant 0 : i32
    %c0_i32_2 = arith.constant 0 : i32
    return %c0_i32, %c0_i32_0, %c0_i32_1 : i32, i32, i32
  }
  func.func @transform_4(%arg0: i32) -> (i32, i32) {
    %c0_i32 = arith.constant 0 : i32
    %c0_i32_0 = arith.constant 0 : i32
    return %arg0, %c0_i32 : i32, i32
  }
}

</mosaic_0001>

<llo_original>
// kernel: gactor_forward_batched.1
$region0: #{gactor_forward_batched.1}
  #allocation0 [shape = 'u32[]', space=smem, size = 0x4, offset = 0x4, fixed_abs, tag = 'smem constant byte address 0x4 - core index']
  #allocation1 [shape = 'u32[144,128]{1,0:T(1,128)}', space=vmem, size = 0x12000, scoped, tag = 'internal scratch']
  %s0 = inlined_call_operand.vmem [shape: bf16[256,256], index: 0, kind: input, shape index: {}]
  %s1 = inlined_call_operand.vmem [shape: f32[512,32], index: 1, kind: input, shape index: {}]
  %s2 = inlined_call_operand.vmem [shape: bf16[5,32,32], index: 2, kind: input, shape index: {}]
  %s3 = inlined_call_operand.vmem [shape: f32[5,1,32], index: 3, kind: input, shape index: {}]
  %s4 = inlined_call_operand.vmem [shape: f32[512,32], index: 4, kind: output, shape index: {}]
  %s5 = sld [smem:[#allocation0]]
  $region49: #{gactor_forward_batched.1} parent=0
    _
  %s7 = ssub.s32 1, %s5
  %s8 = scalar_select 0, %s7, %s5
  loop: start=0, step=1, limit=4
  $region2: #{gactor_forward_batched.1} parent=0 // loop_pre_header
    _
  $region3: #{gactor_forward_batched.1} parent=0 // loop_header
    %s10 = sphi 0, %s14
    %p11 = scmp.ge.s32.totalorder %s10, 4
    %s18 = sphi 0, %s18
    %s20 = sphi 0, %s18
    %s21 = sphi 0, %s20
    %s35 = sphi 0, %s21
    %s41 = sphi 0, %s43
    %s44 = sphi 0, %s41
    %s45 = sphi 0, %s44
    %s61 = sphi 0, %s45
    %s65 = sphi 0, %s65
    %s67 = sphi 0, %s65
    %s68 = sphi 0, %s67
    %s82 = sphi 0, %s68
    %s86 = sphi 0, %s86
    %s88 = sphi 0, %s86
    %s89 = sphi 0, %s88
    %s103 = sphi 0, %s89
    %s109 = sphi 0, %s111
    %s112 = sphi 0, %s109
    %s113 = sphi 0, %s112
    %s129 = sphi 0, %s113
  $region4: #{gactor_forward_batched.1} parent=0 // loop_header_branch
    %13 = sbr.rel (%p11) target = $region8
  $region5: #{gactor_forward_batched.1} parent=0 // loop_body
    %s15 = ssub.s32 %s10, 1
    %s16 = ssub.s32 %s10, 2
    %s17 = sadd.s32 %s10, 1
    %s19 = sadd.s32 %s18, 1
    %p22 = scmp.eq.s32.totalorder %s10, 1
    %p23 = scmp.ne.s32.totalorder %s18, %s20
    %p24 = scmp.eq.s32.totalorder %s10, 0
    %p25 = por %p23, %p24
    %p26 = scmp.ne.s32.totalorder %s18, %s20
    %p27 = scmp.eq.s32.totalorder %s15, 1
    %p28 = por %p26, %p27
    %p29 = scmp.ne.s32.totalorder %s20, %s21
    %p30 = scmp.eq.s32.totalorder %s15, 0
    %p31 = por %p29, %p30
    %p32 = scmp.ne.s32.totalorder %s20, %s21
    %p33 = scmp.eq.s32.totalorder %s16, 1
    %p34 = por %p32, %p33
    %p36 = scmp.ne.s32.totalorder %s21, %s35
    %p37 = scmp.eq.s32.totalorder %s16, 0
    %p38 = por %p36, %p37
    %s39 = ssub.s32 %s10, %s17
    %p40 = scmp.eq.s32.totalorder %s39, 0
    %s42 = sadd.s32 %s41, 1
    %s43 = scalar_select %p40, %s41, %s42
    %p46 = pneg %p40
    %p47 = scmp.eq.s32.totalorder %s10, 1
    %p48 = por %p46, %p47
    %p49 = scmp.ne.s32.totalorder %s41, %s44
    %p50 = scmp.eq.s32.totalorder %s10, 0
    %p51 = por %p49, %p50
    %p52 = scmp.ne.s32.totalorder %s41, %s44
    %p53 = scmp.eq.s32.totalorder %s15, 1
    %p54 = por %p52, %p53
    %p55 = scmp.ne.s32.totalorder %s44, %s45
    %p56 = scmp.eq.s32.totalorder %s15, 0
    %p57 = por %p55, %p56
    %p58 = scmp.ne.s32.totalorder %s44, %s45
    %p59 = scmp.eq.s32.totalorder %s16, 1
    %p60 = por %p58, %p59
    %p62 = scmp.ne.s32.totalorder %s45, %s61
    %p63 = scmp.eq.s32.totalorder %s16, 0
    %p64 = por %p62, %p63
    %s66 = sadd.s32 %s65, 1
    %p69 = scmp.eq.s32.totalorder %s10, 1
    %p70 = scmp.ne.s32.totalorder %s65, %s67
    %p71 = scmp.eq.s32.totalorder %s10, 0
    %p72 = por %p70, %p71
    %p73 = scmp.ne.s32.totalorder %s65, %s67
    %p74 = scmp.eq.s32.totalorder %s15, 1
    %p75 = por %p73, %p74
    %p76 = scmp.ne.s32.totalorder %s67, %s68
    %p77 = scmp.eq.s32.totalorder %s15, 0
    %p78 = por %p76, %p77
    %p79 = scmp.ne.s32.totalorder %s67, %s68
    %p80 = scmp.eq.s32.totalorder %s16, 1
    %p81 = por %p79, %p80
    %p83 = scmp.ne.s32.totalorder %s68, %s82
    %p84 = scmp.eq.s32.totalorder %s16, 0
    %p85 = por %p83, %p84
    %s87 = sadd.s32 %s86, 1
    %p90 = scmp.eq.s32.totalorder %s10, 1
    %p91 = scmp.ne.s32.totalorder %s86, %s88
    %p92 = scmp.eq.s32.totalorder %s10, 0
    %p93 = por %p91, %p92
    %p94 = scmp.ne.s32.totalorder %s86, %s88
    %p95 = scmp.eq.s32.totalorder %s15, 1
    %p96 = por %p94, %p95
    %p97 = scmp.ne.s32.totalorder %s88, %s89
    %p98 = scmp.eq.s32.totalorder %s15, 0
    %p99 = por %p97, %p98
    %p100 = scmp.ne.s32.totalorder %s88, %s89
    %p101 = scmp.eq.s32.totalorder %s16, 1
    %p102 = por %p100, %p101
    %p104 = scmp.ne.s32.totalorder %s89, %s103
    %p105 = scmp.eq.s32.totalorder %s16, 0
    %p106 = por %p104, %p105
    %s107 = ssub.s32 %s10, %s17
    %p108 = scmp.eq.s32.totalorder %s107, 0
    %s110 = sadd.s32 %s109, 1
    %s111 = scalar_select %p108, %s109, %s110
    %p114 = pneg %p108
    %p115 = scmp.eq.s32.totalorder %s10, 1
    %p116 = por %p114, %p115
    %p117 = scmp.ne.s32.totalorder %s109, %s112
    %p118 = scmp.eq.s32.totalorder %s10, 0
    %p119 = por %p117, %p118
    %p120 = scmp.ne.s32.totalorder %s109, %s112
    %p121 = scmp.eq.s32.totalorder %s15, 1
    %p122 = por %p120, %p121
    %p123 = scmp.ne.s32.totalorder %s112, %s113
    %p124 = scmp.eq.s32.totalorder %s15, 0
    %p125 = por %p123, %p124
    %p126 = scmp.ne.s32.totalorder %s112, %s113
    %p127 = scmp.eq.s32.totalorder %s16, 1
    %p128 = por %p126, %p127
    %p130 = scmp.ne.s32.totalorder %s113, %s129
    %p131 = scmp.eq.s32.totalorder %s16, 0
    %p132 = por %p130, %p131
    %p133 = scmp.le.s32.totalorder 1, %s10
    %p134 = scmp.lt.s32.totalorder %s10, 3
    %p135 = pnand %p133, %p134
    %p136 = pneg %p135
    // Predicated region
    $region9: #{gactor_forward_batched.1} parent=5 // pred_check
      _
    $region10: #{gactor_forward_batched.1} parent=5 // pred_check_branch
      %138 = sbr.rel (%p135) target = $region12
    $region11: #{gactor_forward_batched.1} parent=5 // pred_region
      %s139 = ssub.s32 %s10, 1
      // Predicated region
      $region13: #{gactor_forward_batched.1} parent=11 // pred_check
        %p140 = pneg %p31
      $region14: #{gactor_forward_batched.1} parent=11 // pred_check_branch
        %142 = sbr.rel (%p140) target = $region16
      $region15: #{gactor_forward_batched.1} parent=11 // pred_region
        _
      $region16: #{gactor_forward_batched.1} parent=11 // pred_fallthru
        _
      // Predicated region
      $region17: #{gactor_forward_batched.1} parent=11 // pred_check
        %p143 = pneg %p78
      $region18: #{gactor_forward_batched.1} parent=11 // pred_check_branch
        %145 = sbr.rel (%p143) target = $region20
      $region19: #{gactor_forward_batched.1} parent=11 // pred_region
        _
      $region20: #{gactor_forward_batched.1} parent=11 // pred_fallthru
        _
      // Predicated region
      $region21: #{gactor_forward_batched.1} parent=11 // pred_check
        %p146 = pneg %p99
      $region22: #{gactor_forward_batched.1} parent=11 // pred_check_branch
        %148 = sbr.rel (%p146) target = $region24
      $region23: #{gactor_forward_batched.1} parent=11 // pred_region
        _
      $region24: #{gactor_forward_batched.1} parent=11 // pred_fallthru
        _
    $region12: #{gactor_forward_batched.1} parent=5 // pred_fallthru
      _
    %p149 = scmp.lt.s32.totalorder %s10, 2
    // Predicated region
    $region25: #{gactor_forward_batched.1} parent=5 // pred_check
      %p150 = pneg %p149
    $region26: #{gactor_forward_batched.1} parent=5 // pred_check_branch
      %152 = sbr.rel (%p150) target = $region28
    $region27: #{gactor_forward_batched.1} parent=5 // pred_region
      // Predicated region
      $region29: #{gactor_forward_batched.1} parent=27 // pred_check
        %p153 = pneg %p51
      $region30: #{gactor_forward_batched.1} parent=27 // pred_check_branch
        %155 = sbr.rel (%p153) target = $region32
      $region31: #{gactor_forward_batched.1} parent=27 // pred_region
        %s156 = smul.u32 32, %s10
        %p157 = scmp.lt.s32.totalorder %s156, 63
        %s158 = scalar_select %p157, %s156, 63
        %s159 = smul.addr %s158, 8
        %s160 = scalar_lea.vmem %s1, %s159
        %s161 = smul.u32 32, %s10
      $region32: #{gactor_forward_batched.1} parent=27 // pred_fallthru
        _
    $region28: #{gactor_forward_batched.1} parent=5 // pred_fallthru
      _
    %p162 = scmp.le.s32.totalorder 1, %s10
    %p163 = scmp.lt.s32.totalorder %s10, 3
    %p164 = pnand %p162, %p163
    %p165 = pneg %p164
    // Predicated region
    $region33: #{gactor_forward_batched.1} parent=5 // pred_check
      _
    $region34: #{gactor_forward_batched.1} parent=5 // pred_check_branch
      %167 = sbr.rel (%p164) target = $region36
    $region35: #{gactor_forward_batched.1} parent=5 // pred_region
      %s168 = ssub.s32 %s10, 1
      %p169 = pneg %p31
      %p170 = pneg %p28
      %s171 = smul.u32 32, %s15
      %p172 = scmp.lt.s32.totalorder %s171, 63
      %s173 = scalar_select %p172, %s171, 63
      %s174 = smul.addr %s173, 8
      %s175 = scalar_lea.vmem %s1, %s174
      %p176 = pneg %p57
      %p177 = pneg %p54
      %p178 = pneg %p78
      %p179 = pneg %p75
      %p180 = pneg %p99
      %p181 = pneg %p96
      %p182 = pneg %p125
      %p183 = pneg %p122
      %s184 = smul.u32 32, %s15
      %p185 = scmp.lt.s32.totalorder %s184, 63
      %s186 = scalar_select %p185, %s184, 63
      %s187 = smul.addr %s186, 8
      %s188 = scalar_lea.vmem %s4, %s187
      %s189 = smul.u32 32, %s15
      %p190 = scmp.lt.s32.totalorder %s189, 63
      %s191 = scalar_select %p190, %s189, 63
      %s192 = smul.addr %s191, 8
      %s193 = scalar_lea.vmem %s1, %s192
      %s194 = smul.u32 32, %s15
      %s195 = smul.u32 32, %s15
      %p196 = scmp.lt.s32.totalorder %s195, 63
      %s197 = scalar_select %p196, %s195, 63
      %s198 = smul.addr %s197, 8
      %s199 = scalar_lea.vmem %s4, %s198
      %s200 = smul.u32 32, %s15
      %v202 = vld [vmem:[%s0] sm:$0xff]
      %v203 = vld [vmem:[%s0 + $0x8] sm:$0xff]
      %v204 = vld [vmem:[%s0 + $0x10] sm:$0xff]
      %v205 = vld [vmem:[%s0 + $0x18] sm:$0xff]
      %v206 = vld [vmem:[%s0 + $0x20] sm:$0xff]
      %v207 = vld [vmem:[%s0 + $0x28] sm:$0xff]
      %v208 = vld [vmem:[%s0 + $0x30] sm:$0xff]
      %v209 = vld [vmem:[%s0 + $0x38] sm:$0xff]
      %v210 = vld [vmem:[%s0 + $0x40] sm:$0xff]
      %v211 = vld [vmem:[%s0 + $0x48] sm:$0xff]
      %v212 = vld [vmem:[%s0 + $0x50] sm:$0xff]
      %v213 = vld [vmem:[%s0 + $0x58] sm:$0xff]
      %v214 = vld [vmem:[%s0 + $0x60] sm:$0xff]
      %v215 = vld [vmem:[%s0 + $0x68] sm:$0xff]
      %v216 = vld [vmem:[%s0 + $0x70] sm:$0xff]
      %v217 = vld [vmem:[%s0 + $0x78] sm:$0xff]
      %v218 = vld [vmem:[%s0 + $0x80] sm:$0xff]
      %v219 = vld [vmem:[%s0 + $0x88] sm:$0xff]
      %v220 = vld [vmem:[%s0 + $0x90] sm:$0xff]
      %v221 = vld [vmem:[%s0 + $0x98] sm:$0xff]
      %v222 = vld [vmem:[%s0 + $0xa0] sm:$0xff]
      %v223 = vld [vmem:[%s0 + $0xa8] sm:$0xff]
      %v224 = vld [vmem:[%s0 + $0xb0] sm:$0xff]
      %v225 = vld [vmem:[%s0 + $0xb8] sm:$0xff]
      %v226 = vld [vmem:[%s0 + $0xc0] sm:$0xff]
      %v227 = vld [vmem:[%s0 + $0xc8] sm:$0xff]
      %v228 = vld [vmem:[%s0 + $0xd0] sm:$0xff]
      %v229 = vld [vmem:[%s0 + $0xd8] sm:$0xff]
      %v230 = vld [vmem:[%s0 + $0xe0] sm:$0xff]
      %v231 = vld [vmem:[%s0 + $0xe8] sm:$0xff]
      %v232 = vld [vmem:[%s0 + $0xf0] sm:$0xff]
      %v233 = vld [vmem:[%s0 + $0xf8] sm:$0xff]
      %v234 = vld [vmem:[%s193] sm:$0xff]
      %v235 = vld [vmem:[%s193 + $0x8] sm:$0xff]
      %v236 = vld [vmem:[%s193 + $0x10] sm:$0xff]
      %v237 = vld [vmem:[%s193 + $0x18] sm:$0xff]
      %v238 = vld [vmem:[%s193 + $0x20] sm:$0xff]
      %v239 = vld [vmem:[%s193 + $0x28] sm:$0xff]
      %v240 = vld [vmem:[%s193 + $0x30] sm:$0xff]
      %v241 = vld [vmem:[%s193 + $0x38] sm:$0xff]
      %v242 = vld [vmem:[%s193 + $0x40] sm:$0xff]
      %v243 = vld [vmem:[%s193 + $0x48] sm:$0xff]
      %v244 = vld [vmem:[%s193 + $0x50] sm:$0xff]
      %v245 = vld [vmem:[%s193 + $0x58] sm:$0xff]
      %v246 = vld [vmem:[%s193 + $0x60] sm:$0xff]
      %v247 = vld [vmem:[%s193 + $0x68] sm:$0xff]
      %v248 = vld [vmem:[%s193 + $0x70] sm:$0xff]
      %v249 = vld [vmem:[%s193 + $0x78] sm:$0xff]
      %v250 = vld [vmem:[%s193 + $0x80] sm:$0xff]
      %v251 = vld [vmem:[%s193 + $0x88] sm:$0xff]
      %v252 = vld [vmem:[%s193 + $0x90] sm:$0xff]
      %v253 = vld [vmem:[%s193 + $0x98] sm:$0xff]
      %v254 = vld [vmem:[%s193 + $0xa0] sm:$0xff]
      %v255 = vld [vmem:[%s193 + $0xa8] sm:$0xff]
      %v256 = vld [vmem:[%s193 + $0xb0] sm:$0xff]
      %v257 = vld [vmem:[%s193 + $0xb8] sm:$0xff]
      %v258 = vld [vmem:[%s193 + $0xc0] sm:$0xff]
      %v259 = vld [vmem:[%s193 + $0xc8] sm:$0xff]
      %v260 = vld [vmem:[%s193 + $0xd0] sm:$0xff]
      %v261 = vld [vmem:[%s193 + $0xd8] sm:$0xff]
      %v262 = vld [vmem:[%s193 + $0xe0] sm:$0xff]
      %v263 = vld [vmem:[%s193 + $0xe8] sm:$0xff]
      %v264 = vld [vmem:[%s193 + $0xf0] sm:$0xff]
      %v265 = vld [vmem:[%s193 + $0xf8] sm:$0xff]
      %v266 = vpack.c.bf16 %v235, %v234
      %v267 = vpack.c.bf16 %v237, %v236
      %v268 = vpack.c.bf16 %v239, %v238
      %v269 = vpack.c.bf16 %v241, %v240
      %v270 = vpack.c.bf16 %v243, %v242
      %v271 = vpack.c.bf16 %v245, %v244
      %v272 = vpack.c.bf16 %v247, %v246
      %v273 = vpack.c.bf16 %v249, %v248
      %v274 = vpack.c.bf16 %v251, %v250
      %v275 = vpack.c.bf16 %v253, %v252
      %v276 = vpack.c.bf16 %v255, %v254
      %v277 = vpack.c.bf16 %v257, %v256
      %v278 = vpack.c.bf16 %v259, %v258
      %v279 = vpack.c.bf16 %v261, %v260
      %v280 = vpack.c.bf16 %v263, %v262
      %v281 = vpack.c.bf16 %v265, %v264
      %v282 = vld [vmem:[%s2] sm:$0xf]
      %v283 = vld [vmem:[%s2 + $0x4] sm:$0xf]
      %v284 = vld [vmem:[%s2 + $0x8] sm:$0xf]
      %v285 = vld [vmem:[%s2 + $0xc] sm:$0xf]
      %v290 = vunpack.c.l.b16 %v282
      %v291 = vunpack.c.l.b16 %v283
      %v292 = vunpack.c.l.b16 %v284
      %v293 = vunpack.c.l.b16 %v285
      %v294 = vpack.c.b16 %v291, %v290
      %v295 = vpack.c.b16 %v293, %v292
      %vm298 = vcmask 261120
      %v300 = vsel %vm298, %v266, 0
      %v303 = vsel %vm298, %v267, 0
      %v306 = vsel %vm298, %v268, 0
      %v309 = vsel %vm298, %v269, 0
      %v312 = vsel %vm298, %v270, 0
      %v315 = vsel %vm298, %v271, 0
      %v318 = vsel %vm298, %v272, 0
      %v321 = vsel %vm298, %v273, 0
      %v324 = vsel %vm298, %v274, 0
      %v327 = vsel %vm298, %v275, 0
      %v330 = vsel %vm298, %v276, 0
      %v333 = vsel %vm298, %v277, 0
      %v336 = vsel %vm298, %v278, 0
      %v339 = vsel %vm298, %v279, 0
      %v342 = vsel %vm298, %v280, 0
      %v345 = vsel %vm298, %v281, 0
      %347 = vmatprep.subr.bf16.mxu0 0
      %348 = vmatpush1.bf16.msra.mxu0 %v294
      %349 = vmatprep.subr.bf16.mxu0 0
      %350 = vmatpush1.bf16.msra.mxu0 %v295
      %351 = vmatprep.subr.bf16.mxu0 0
      %352 = vmatpush1.bf16.msra.mxu0 0
      %353 = vmatprep.subr.bf16.mxu0 0
      %354 = vmatpush1.bf16.msra.mxu0 0
      %355 = vmatprep.subr.bf16.mxu0 0
      %356 = vmatpush1.bf16.msra.mxu0 0
      %357 = vmatprep.subr.bf16.mxu0 0
      %358 = vmatpush1.bf16.msra.mxu0 0
      %359 = vmatprep.subr.bf16.mxu0 0
      %360 = vmatpush1.bf16.msra.mxu0 0
      %361 = vmatprep.subr.bf16.mxu0 0
      %362 = vmatpush1.bf16.msra.mxu0 0
      %363 = vmatprep.subr.bf16.mxu0 0
      %364 = vmatpush1.bf16.msra.mxu0 0
      %365 = vmatprep.subr.bf16.mxu0 0
      %366 = vmatpush1.bf16.msra.mxu0 0
      %367 = vmatprep.subr.bf16.mxu0 0
      %368 = vmatpush1.bf16.msra.mxu0 0
      %369 = vmatprep.subr.bf16.mxu0 0
      %370 = vmatpush1.bf16.msra.mxu0 0
      %371 = vmatprep.subr.bf16.mxu0 0
      %372 = vmatpush1.bf16.msra.mxu0 0
      %373 = vmatprep.subr.bf16.mxu0 0
      %374 = vmatpush1.bf16.msra.mxu0 0
      %375 = vmatprep.subr.bf16.mxu0 0
      %376 = vmatpush1.bf16.msra.mxu0 0
      %377 = vmatprep.subr.bf16.mxu0 0
      %378 = vmatpush1.bf16.msra.mxu0 0
      %379 = vmatprep.mubr.bf16.mxu0 0
      %380 = vmatmul.mubr.bf16.gmra.mrb[0].mxu0 %v300
      %v381 = vpop.f32.mrb[0].mxu0
      %v382 = vadd.f32 0.0, %v381
      %v383 = vpop.f32.mrb[0].mxu0
      %v384 = vpop.f32.mrb[0].mxu0
      %v385 = vadd.f32 0.0, %v384
      %v386 = vpop.f32.mrb[0].mxu0
      %387 = vmatprep.mubr.bf16.mxu0 0
      %388 = vmatmul.mubr.bf16.gmra.mrb[0].mxu0 %v303
      %v389 = vpop.f32.mrb[0].mxu0
      %v390 = vadd.f32 0.0, %v389
      %v391 = vpop.f32.mrb[0].mxu0
      %v392 = vpop.f32.mrb[0].mxu0
      %v393 = vadd.f32 0.0, %v392
      %v394 = vpop.f32.mrb[0].mxu0
      %395 = vmatprep.mubr.bf16.mxu0 0
      %396 = vmatmul.mubr.bf16.gmra.mrb[0].mxu0 %v306
      %v397 = vpop.f32.mrb[0].mxu0
      %v398 = vadd.f32 0.0, %v397
      %v399 = vpop.f32.mrb[0].mxu0
      %v400 = vpop.f32.mrb[0].mxu0
      %v401 = vadd.f32 0.0, %v400
      %v402 = vpop.f32.mrb[0].mxu0
      %403 = vmatprep.mubr.bf16.mxu0 0
      %404 = vmatmul.mubr.bf16.gmra.mrb[0].mxu0 %v309
      %v405 = vpop.f32.mrb[0].mxu0
      %v406 = vadd.f32 0.0, %v405
      %v407 = vpop.f32.mrb[0].mxu0
      %v408 = vpop.f32.mrb[0].mxu0
      %v409 = vadd.f32 0.0, %v408
      %v410 = vpop.f32.mrb[0].mxu0
      %411 = vmatprep.mubr.bf16.mxu0 0
      %412 = vmatmul.mubr.bf16.gmra.mrb[0].mxu0 %v312
      %v413 = vpop.f32.mrb[0].mxu0
      %v414 = vadd.f32 0.0, %v413
      %v415 = vpop.f32.mrb[0].mxu0
      %v416 = vpop.f32.mrb[0].mxu0
      %v417 = vadd.f32 0.0, %v416
      %v418 = vpop.f32.mrb[0].mxu0
      %419 = vmatprep.mubr.bf16.mxu0 0
      %420 = vmatmul.mubr.bf16.gmra.mrb[0].mxu0 %v315
      %v421 = vpop.f32.mrb[0].mxu0
      %v422 = vadd.f32 0.0, %v421
      %v423 = vpop.f32.mrb[0].mxu0
      %v424 = vpop.f32.mrb[0].mxu0
      %v425 = vadd.f32 0.0, %v424
      %v426 = vpop.f32.mrb[0].mxu0
      %427 = vmatprep.mubr.bf16.mxu0 0
      %428 = vmatmul.mubr.bf16.gmra.mrb[0].mxu0 %v318
      %v429 = vpop.f32.mrb[0].mxu0
      %v430 = vadd.f32 0.0, %v429
      %v431 = vpop.f32.mrb[0].mxu0
      %v432 = vpop.f32.mrb[0].mxu0
      %v433 = vadd.f32 0.0, %v432
      %v434 = vpop.f32.mrb[0].mxu0
      %435 = vmatprep.mubr.bf16.mxu0 0
      %436 = vmatmul.mubr.bf16.gmra.mrb[0].mxu0 %v321
      %v437 = vpop.f32.mrb[0].mxu0
      %v438 = vadd.f32 0.0, %v437
      %v439 = vpop.f32.mrb[0].mxu0
      %v440 = vpop.f32.mrb[0].mxu0
      %v441 = vadd.f32 0.0, %v440
      %v442 = vpop.f32.mrb[0].mxu0
      %443 = vmatprep.mubr.bf16.mxu0 0
      %444 = vmatmul.mubr.bf16.gmra.mrb[0].mxu0 %v324
      %v445 = vpop.f32.mrb[0].mxu0
      %v446 = vadd.f32 0.0, %v445
      %v447 = vpop.f32.mrb[0].mxu0
      %v448 = vpop.f32.mrb[0].mxu0
      %v449 = vadd.f32 0.0, %v448
      %v450 = vpop.f32.mrb[0].mxu0
      %451 = vmatprep.mubr.bf16.mxu0 0
      %452 = vmatmul.mubr.bf16.gmra.mrb[0].mxu0 %v327
      %v453 = vpop.f32.mrb[0].mxu0
      %v454 = vadd.f32 0.0, %v453
      %v455 = vpop.f32.mrb[0].mxu0
      %v456 = vpop.f32.mrb[0].mxu0
      %v457 = vadd.f32 0.0, %v456
      %v458 = vpop.f32.mrb[0].mxu0
      %459 = vmatprep.mubr.bf16.mxu0 0
      %460 = vmatmul.mubr.bf16.gmra.mrb[0].mxu0 %v330
      %v461 = vpop.f32.mrb[0].mxu0
      %v462 = vadd.f32 0.0, %v461
      %v463 = vpop.f32.mrb[0].mxu0
      %v464 = vpop.f32.mrb[0].mxu0
      %v465 = vadd.f32 0.0, %v464
      %v466 = vpop.f32.mrb[0].mxu0
      %467 = vmatprep.mubr.bf16.mxu0 0
      %468 = vmatmul.mubr.bf16.gmra.mrb[0].mxu0 %v333
      %v469 = vpop.f32.mrb[0].mxu0
      %v470 = vadd.f32 0.0, %v469
      %v471 = vpop.f32.mrb[0].mxu0
      %v472 = vpop.f32.mrb[0].mxu0
      %v473 = vadd.f32 0.0, %v472
      %v474 = vpop.f32.mrb[0].mxu0
      %475 = vmatprep.mubr.bf16.mxu0 0
      %476 = vmatmul.mubr.bf16.gmra.mrb[0].mxu0 %v336
      %v477 = vpop.f32.mrb[0].mxu0
      %v478 = vadd.f32 0.0, %v477
      %v479 = vpop.f32.mrb[0].mxu0
      %v480 = vpop.f32.mrb[0].mxu0
      %v481 = vadd.f32 0.0, %v480
      %v482 = vpop.f32.mrb[0].mxu0
      %483 = vmatprep.mubr.bf16.mxu0 0
      %484 = vmatmul.mubr.bf16.gmra.mrb[0].mxu0 %v339
      %v485 = vpop.f32.mrb[0].mxu0
      %v486 = vadd.f32 0.0, %v485
      %v487 = vpop.f32.mrb[0].mxu0
      %v488 = vpop.f32.mrb[0].mxu0
      %v489 = vadd.f32 0.0, %v488
      %v490 = vpop.f32.mrb[0].mxu0
      %491 = vmatprep.mubr.bf16.mxu0 0
      %492 = vmatmul.mubr.bf16.gmra.mrb[0].mxu0 %v342
      %v493 = vpop.f32.mrb[0].mxu0
      %v494 = vadd.f32 0.0, %v493
      %v495 = vpop.f32.mrb[0].mxu0
      %v496 = vpop.f32.mrb[0].mxu0
      %v497 = vadd.f32 0.0, %v496
      %v498 = vpop.f32.mrb[0].mxu0
      %499 = vmatprep.mubr.bf16.mxu0 0
      %500 = vmatmul.mubr.bf16.gmra.mrb[0].mxu0 %v345
      %v501 = vpop.f32.mrb[0].mxu0
      %v502 = vadd.f32 0.0, %v501
      %v503 = vpop.f32.mrb[0].mxu0
      %v504 = vpop.f32.mrb[0].mxu0
      %v505 = vadd.f32 0.0, %v504
      %v506 = vpop.f32.mrb[0].mxu0
      %507 = vdwg.mxu0
      %v508 = vpack.c.bf16 %v385, %v382
      %v509 = vpack.c.bf16 %v393, %v390
      %v510 = vpack.c.bf16 %v401, %v398
      %v511 = vpack.c.bf16 %v409, %v406
      %v512 = vpack.c.bf16 %v417, %v414
      %v513 = vpack.c.bf16 %v425, %v422
      %v514 = vpack.c.bf16 %v433, %v430
      %v515 = vpack.c.bf16 %v441, %v438
      %v516 = vpack.c.bf16 %v449, %v446
      %v517 = vpack.c.bf16 %v457, %v454
      %v518 = vpack.c.bf16 %v465, %v462
      %v519 = vpack.c.bf16 %v473, %v470
      %v520 = vpack.c.bf16 %v481, %v478
      %v521 = vpack.c.bf16 %v489, %v486
      %v522 = vpack.c.bf16 %v497, %v494
      %v523 = vpack.c.bf16 %v505, %v502
      %v524 = vld [vmem:[%s3] sm:$0x1]
      %v526 = vlaneseq
      %v527 = vshrl.u32 %v526, 7
      %v528 = vsub.s32 0, %v527
      %v529 = vrot.slane %v524, %v528
      %v563 = vunpack.c.l.b16 %v202
      %v564 = vunpack.c.h.b16 %v202
      %v565 = vunpack.c.l.b16 %v203
      %v566 = vunpack.c.h.b16 %v203
      %v567 = vunpack.c.l.b16 %v204
      %v568 = vunpack.c.h.b16 %v204
      %v569 = vunpack.c.l.b16 %v205
      %v570 = vunpack.c.h.b16 %v205
      %v571 = vunpack.c.l.b16 %v206
      %v572 = vunpack.c.h.b16 %v206
      %v573 = vunpack.c.l.b16 %v207
      %v574 = vunpack.c.h.b16 %v207
      %v575 = vunpack.c.l.b16 %v208
      %v576 = vunpack.c.h.b16 %v208
      %v577 = vunpack.c.l.b16 %v209
      %v578 = vunpack.c.h.b16 %v209
      %v579 = vunpack.c.l.b16 %v210
      %v580 = vunpack.c.h.b16 %v210
      %v581 = vunpack.c.l.b16 %v211
      %v582 = vunpack.c.h.b16 %v211
      %v583 = vunpack.c.l.b16 %v212
      %v584 = vunpack.c.h.b16 %v212
      %v585 = vunpack.c.l.b16 %v213
      %v586 = vunpack.c.h.b16 %v213
      %v587 = vunpack.c.l.b16 %v214
      %v588 = vunpack.c.h.b16 %v214
      %v589 = vunpack.c.l.b16 %v215
      %v590 = vunpack.c.h.b16 %v215
      %v591 = vunpack.c.l.b16 %v216
      %v592 = vunpack.c.h.b16 %v216
      %v593 = vunpack.c.l.b16 %v217
      %v594 = vunpack.c.h.b16 %v217
      %v595 = vunpack.c.l.b16 %v218
      %v596 = vunpack.c.h.b16 %v218
      %v597 = vunpack.c.l.b16 %v219
      %v598 = vunpack.c.h.b16 %v219
      %v599 = vunpack.c.l.b16 %v220
      %v600 = vunpack.c.h.b16 %v220
      %v601 = vunpack.c.l.b16 %v221
      %v602 = vunpack.c.h.b16 %v221
      %v603 = vunpack.c.l.b16 %v222
      %v604 = vunpack.c.h.b16 %v222
      %v605 = vunpack.c.l.b16 %v223
      %v606 = vunpack.c.h.b16 %v223
      %v607 = vunpack.c.l.b16 %v224
      %v608 = vunpack.c.h.b16 %v224
      %v609 = vunpack.c.l.b16 %v225
      %v610 = vunpack.c.h.b16 %v225
      %v611 = vunpack.c.l.b16 %v226
      %v612 = vunpack.c.h.b16 %v226
      %v613 = vunpack.c.l.b16 %v227
      %v614 = vunpack.c.h.b16 %v227
      %v615 = vunpack.c.l.b16 %v228
      %v616 = vunpack.c.h.b16 %v228
      %v617 = vunpack.c.l.b16 %v229
      %v618 = vunpack.c.h.b16 %v229
      %v619 = vunpack.c.l.b16 %v230
      %v620 = vunpack.c.h.b16 %v230
      %v621 = vunpack.c.l.b16 %v231
      %v622 = vunpack.c.h.b16 %v231
      %v623 = vunpack.c.l.b16 %v232
      %v624 = vunpack.c.h.b16 %v232
      %v625 = vunpack.c.l.b16 %v233
      %v626 = vunpack.c.h.b16 %v233
      %v627 = vpack.c.b16 %v565, %v563
      %v628 = vpack.c.b16 %v566, %v564
      %v629 = vpack.c.b16 %v569, %v567
      %v630 = vpack.c.b16 %v570, %v568
      %v631 = vpack.c.b16 %v573, %v571
      %v632 = vpack.c.b16 %v574, %v572
      %v633 = vpack.c.b16 %v577, %v575
      %v634 = vpack.c.b16 %v578, %v576
      %v635 = vpack.c.b16 %v581, %v579
      %v636 = vpack.c.b16 %v582, %v580
      %v637 = vpack.c.b16 %v585, %v583
      %v638 = vpack.c.b16 %v586, %v584
      %v639 = vpack.c.b16 %v589, %v587
      %v640 = vpack.c.b16 %v590, %v588
      %v641 = vpack.c.b16 %v593, %v591
      %v642 = vpack.c.b16 %v594, %v592
      %v643 = vpack.c.b16 %v597, %v595
      %v644 = vpack.c.b16 %v598, %v596
      %v645 = vpack.c.b16 %v601, %v599
      %v646 = vpack.c.b16 %v602, %v600
      %v647 = vpack.c.b16 %v605, %v603
      %v648 = vpack.c.b16 %v606, %v604
      %v649 = vpack.c.b16 %v609, %v607
      %v650 = vpack.c.b16 %v610, %v608
      %v651 = vpack.c.b16 %v613, %v611
      %v652 = vpack.c.b16 %v614, %v612
      %v653 = vpack.c.b16 %v617, %v615
      %v654 = vpack.c.b16 %v618, %v616
      %v655 = vpack.c.b16 %v621, %v619
      %v656 = vpack.c.b16 %v622, %v620
      %v657 = vpack.c.b16 %v625, %v623
      %v658 = vpack.c.b16 %v626, %v624
      %691 = vmatprep.subr.bf16.mxu0 0
      %692 = vmatpush1.bf16.msra.mxu0 %v508
      %693 = vmatprep.subr.bf16.mxu0 0
      %694 = vmatpush1.bf16.msra.mxu0 %v509
      %695 = vmatprep.subr.bf16.mxu0 0
      %696 = vmatpush1.bf16.msra.mxu0 %v510
      %697 = vmatprep.subr.bf16.mxu0 0
      %698 = vmatpush1.bf16.msra.mxu0 %v511
      %699 = vmatprep.subr.bf16.mxu0 0
      %700 = vmatpush1.bf16.msra.mxu0 %v512
      %701 = vmatprep.subr.bf16.mxu0 0
      %702 = vmatpush1.bf16.msra.mxu0 %v513
      %703 = vmatprep.subr.bf16.mxu0 0
      %704 = vmatpush1.bf16.msra.mxu0 %v514
      %705 = vmatprep.subr.bf16.mxu0 0
      %706 = vmatpush1.bf16.msra.mxu0 %v515
      %707 = vmatprep.subr.bf16.mxu0 0
      %708 = vmatpush1.bf16.msra.mxu0 %v516
      %709 = vmatprep.subr.bf16.mxu0 0
      %710 = vmatpush1.bf16.msra.mxu0 %v517
      %711 = vmatprep.subr.bf16.mxu0 0
      %712 = vmatpush1.bf16.msra.mxu0 %v518
      %713 = vmatprep.subr.bf16.mxu0 0
      %714 = vmatpush1.bf16.msra.mxu0 %v519
      %715 = vmatprep.subr.bf16.mxu0 0
      %716 = vmatpush1.bf16.msra.mxu0 %v520
      %717 = vmatprep.subr.bf16.mxu0 0
      %718 = vmatpush1.bf16.msra.mxu0 %v521
      %719 = vmatprep.subr.bf16.mxu0 0
      %720 = vmatpush1.bf16.msra.mxu0 %v522
      %721 = vmatprep.subr.bf16.mxu0 0
      %722 = vmatpush1.bf16.msra.mxu0 %v523
      %723 = vmatprep.mubr.bf16.mxu0 %v628
      %724 = vmatmul.mubr.bf16.gmra.mrb[0].mxu0 %v627
      %v725 = vpop.f32.mrb[0].mxu0
      %v726 = vadd.f32 %v529, %v725
      %v727 = vpop.f32.mrb[0].mxu0
      %v728 = vpop.f32.mrb[0].mxu0
      %v729 = vadd.f32 %v529, %v728
      %v730 = vpop.f32.mrb[0].mxu0
      %731 = vmatprep.mubr.bf16.mxu0 %v630
      %732 = vmatmul.mubr.bf16.gmra.mrb[0].mxu0 %v629
      %v733 = vpop.f32.mrb[0].mxu0
      %v734 = vadd.f32 %v529, %v733
      %v735 = vpop.f32.mrb[0].mxu0
      %v736 = vpop.f32.mrb[0].mxu0
      %v737 = vadd.f32 %v529, %v736
      %v738 = vpop.f32.mrb[0].mxu0
      %739 = vmatprep.mubr.bf16.mxu0 %v632
      %740 = vmatmul.mubr.bf16.gmra.mrb[0].mxu0 %v631
      %v741 = vpop.f32.mrb[0].mxu0
      %v742 = vadd.f32 %v529, %v741
      %v743 = vpop.f32.mrb[0].mxu0
      %v744 = vpop.f32.mrb[0].mxu0
      %v745 = vadd.f32 %v529, %v744
      %v746 = vpop.f32.mrb[0].mxu0
      %747 = vmatprep.mubr.bf16.mxu0 %v634
      %748 = vmatmul.mubr.bf16.gmra.mrb[0].mxu0 %v633
      %v749 = vpop.f32.mrb[0].mxu0
      %v750 = vadd.f32 %v529, %v749
      %v751 = vpop.f32.mrb[0].mxu0
      %v752 = vpop.f32.mrb[0].mxu0
      %v753 = vadd.f32 %v529, %v752
      %v754 = vpop.f32.mrb[0].mxu0
      %755 = vmatprep.mubr.bf16.mxu0 %v636
      %756 = vmatmul.mubr.bf16.gmra.mrb[0].mxu0 %v635
      %v757 = vpop.f32.mrb[0].mxu0
      %v758 = vadd.f32 %v529, %v757
      %v759 = vpop.f32.mrb[0].mxu0
      %v760 = vpop.f32.mrb[0].mxu0
      %v761 = vadd.f32 %v529, %v760
      %v762 = vpop.f32.mrb[0].mxu0
      %763 = vmatprep.mubr.bf16.mxu0 %v638
      %764 = vmatmul.mubr.bf16.gmra.mrb[0].mxu0 %v637
      %v765 = vpop.f32.mrb[0].mxu0
      %v766 = vadd.f32 %v529, %v765
      %v767 = vpop.f32.mrb[0].mxu0
      %v768 = vpop.f32.mrb[0].mxu0
      %v769 = vadd.f32 %v529, %v768
      %v770 = vpop.f32.mrb[0].mxu0
      %771 = vmatprep.mubr.bf16.mxu0 %v640
      %772 = vmatmul.mubr.bf16.gmra.mrb[0].mxu0 %v639
      %v773 = vpop.f32.mrb[0].mxu0
      %v774 = vadd.f32 %v529, %v773
      %v775 = vpop.f32.mrb[0].mxu0
      %v776 = vpop.f32.mrb[0].mxu0
      %v777 = vadd.f32 %v529, %v776
      %v778 = vpop.f32.mrb[0].mxu0
      %779 = vmatprep.mubr.bf16.mxu0 %v642
      %780 = vmatmul.mubr.bf16.gmra.mrb[0].mxu0 %v641
      %v781 = vpop.f32.mrb[0].mxu0
      %v782 = vadd.f32 %v529, %v781
      %v783 = vpop.f32.mrb[0].mxu0
      %v784 = vpop.f32.mrb[0].mxu0
      %v785 = vadd.f32 %v529, %v784
      %v786 = vpop.f32.mrb[0].mxu0
      %787 = vmatprep.mubr.bf16.mxu0 %v644
      %788 = vmatmul.mubr.bf16.gmra.mrb[0].mxu0 %v643
      %v789 = vpop.f32.mrb[0].mxu0
      %v790 = vadd.f32 %v529, %v789
      %v791 = vpop.f32.mrb[0].mxu0
      %v792 = vpop.f32.mrb[0].mxu0
      %v793 = vadd.f32 %v529, %v792
      %v794 = vpop.f32.mrb[0].mxu0
      %795 = vmatprep.mubr.bf16.mxu0 %v646
      %796 = vmatmul.mubr.bf16.gmra.mrb[0].mxu0 %v645
      %v797 = vpop.f32.mrb[0].mxu0
      %v798 = vadd.f32 %v529, %v797
      %v799 = vpop.f32.mrb[0].mxu0
      %v800 = vpop.f32.mrb[0].mxu0
      %v801 = vadd.f32 %v529, %v800
      %v802 = vpop.f32.mrb[0].mxu0
      %803 = vmatprep.mubr.bf16.mxu0 %v648
      %804 = vmatmul.mubr.bf16.gmra.mrb[0].mxu0 %v647
      %v805 = vpop.f32.mrb[0].mxu0
      %v806 = vadd.f32 %v529, %v805
      %v807 = vpop.f32.mrb[0].mxu0
      %v808 = vpop.f32.mrb[0].mxu0
      %v809 = vadd.f32 %v529, %v808
      %v810 = vpop.f32.mrb[0].mxu0
      %811 = vmatprep.mubr.bf16.mxu0 %v650
      %812 = vmatmul.mubr.bf16.gmra.mrb[0].mxu0 %v649
      %v813 = vpop.f32.mrb[0].mxu0
      %v814 = vadd.f32 %v529, %v813
      %v815 = vpop.f32.mrb[0].mxu0
      %v816 = vpop.f32.mrb[0].mxu0
      %v817 = vadd.f32 %v529, %v816
      %v818 = vpop.f32.mrb[0].mxu0
      %819 = vmatprep.mubr.bf16.mxu0 %v652
      %820 = vmatmul.mubr.bf16.gmra.mrb[0].mxu0 %v651
      %v821 = vpop.f32.mrb[0].mxu0
      %v822 = vadd.f32 %v529, %v821
      %v823 = vpop.f32.mrb[0].mxu0
      %v824 = vpop.f32.mrb[0].mxu0
      %v825 = vadd.f32 %v529, %v824
      %v826 = vpop.f32.mrb[0].mxu0
      %827 = vmatprep.mubr.bf16.mxu0 %v654
      %828 = vmatmul.mubr.bf16.gmra.mrb[0].mxu0 %v653
      %v829 = vpop.f32.mrb[0].mxu0
      %v830 = vadd.f32 %v529, %v829
      %v831 = vpop.f32.mrb[0].mxu0
      %v832 = vpop.f32.mrb[0].mxu0
      %v833 = vadd.f32 %v529, %v832
      %v834 = vpop.f32.mrb[0].mxu0
      %835 = vmatprep.mubr.bf16.mxu0 %v656
      %836 = vmatmul.mubr.bf16.gmra.mrb[0].mxu0 %v655
      %v837 = vpop.f32.mrb[0].mxu0
      %v838 = vadd.f32 %v529, %v837
      %v839 = vpop.f32.mrb[0].mxu0
      %v840 = vpop.f32.mrb[0].mxu0
      %v841 = vadd.f32 %v529, %v840
      %v842 = vpop.f32.mrb[0].mxu0
      %843 = vmatprep.mubr.bf16.mxu0 %v658
      %844 = vmatmul.mubr.bf16.gmra.mrb[0].mxu0 %v657
      %v845 = vpop.f32.mrb[0].mxu0
      %v846 = vadd.f32 %v529, %v845
      %v847 = vpop.f32.mrb[0].mxu0
      %v848 = vpop.f32.mrb[0].mxu0
      %v849 = vadd.f32 %v529, %v848
      %v850 = vpop.f32.mrb[0].mxu0
      %851 = vdwg.mxu0
      %v852 = vmax.f32 %v726, 0.0
      %v853 = vmax.f32 %v729, 0.0
      %v854 = vmax.f32 %v734, 0.0
      %v855 = vmax.f32 %v737, 0.0
      %v856 = vmax.f32 %v742, 0.0
      %v857 = vmax.f32 %v745, 0.0
      %v858 = vmax.f32 %v750, 0.0
      %v859 = vmax.f32 %v753, 0.0
      %v860 = vmax.f32 %v758, 0.0
      %v861 = vmax.f32 %v761, 0.0
      %v862 = vmax.f32 %v766, 0.0
      %v863 = vmax.f32 %v769, 0.0
      %v864 = vmax.f32 %v774, 0.0
      %v865 = vmax.f32 %v777, 0.0
      %v866 = vmax.f32 %v782, 0.0
      %v867 = vmax.f32 %v785, 0.0
      %v868 = vmax.f32 %v790, 0.0
      %v869 = vmax.f32 %v793, 0.0
      %v870 = vmax.f32 %v798, 0.0
      %v871 = vmax.f32 %v801, 0.0
      %v872 = vmax.f32 %v806, 0.0
      %v873 = vmax.f32 %v809, 0.0
      %v874 = vmax.f32 %v814, 0.0
      %v875 = vmax.f32 %v817, 0.0
      %v876 = vmax.f32 %v822, 0.0
      %v877 = vmax.f32 %v825, 0.0
      %v878 = vmax.f32 %v830, 0.0
      %v879 = vmax.f32 %v833, 0.0
      %v880 = vmax.f32 %v838, 0.0
      %v881 = vmax.f32 %v841, 0.0
      %v882 = vmax.f32 %v846, 0.0
      %v883 = vmax.f32 %v849, 0.0
      %v884 = vpack.c.bf16 %v853, %v852
      %v885 = vpack.c.bf16 %v855, %v854
      %v886 = vpack.c.bf16 %v857, %v856
      %v887 = vpack.c.bf16 %v859, %v858
      %v888 = vpack.c.bf16 %v861, %v860
      %v889 = vpack.c.bf16 %v863, %v862
      %v890 = vpack.c.bf16 %v865, %v864
      %v891 = vpack.c.bf16 %v867, %v866
      %v892 = vpack.c.bf16 %v869, %v868
      %v893 = vpack.c.bf16 %v871, %v870
      %v894 = vpack.c.bf16 %v873, %v872
      %v895 = vpack.c.bf16 %v875, %v874
      %v896 = vpack.c.bf16 %v877, %v876
      %v897 = vpack.c.bf16 %v879, %v878
      %v898 = vpack.c.bf16 %v881, %v880
      %v899 = vpack.c.bf16 %v883, %v882
      %s900 = scalar_lea.vmem %s2, 16
      %v901 = vld [vmem:[%s900] sm:$0xf]
      %v902 = vld [vmem:[%s900 + $0x4] sm:$0xf]
      %v903 = vld [vmem:[%s900 + $0x8] sm:$0xf]
      %v904 = vld [vmem:[%s900 + $0xc] sm:$0xf]
      %v909 = vunpack.c.l.b16 %v901
      %v910 = vunpack.c.l.b16 %v902
      %v911 = vunpack.c.l.b16 %v903
      %v912 = vunpack.c.l.b16 %v904
      %v913 = vpack.c.b16 %v910, %v909
      %v914 = vpack.c.b16 %v912, %v911
      %v918 = vsel %vm298, %v884, 0
      %v921 = vsel %vm298, %v885, 0
      %v924 = vsel %vm298, %v886, 0
      %v927 = vsel %vm298, %v887, 0
      %v930 = vsel %vm298, %v888, 0
      %v933 = vsel %vm298, %v889, 0
      %v936 = vsel %vm298, %v890, 0
      %v939 = vsel %vm298, %v891, 0
      %v942 = vsel %vm298, %v892, 0
      %v945 = vsel %vm298, %v893, 0
      %v948 = vsel %vm298, %v894, 0
      %v951 = vsel %vm298, %v895, 0
      %v954 = vsel %vm298, %v896, 0
      %v957 = vsel %vm298, %v897, 0
      %v960 = vsel %vm298, %v898, 0
      %v963 = vsel %vm298, %v899, 0
      %965 = vmatprep.subr.bf16.mxu0 0
      %966 = vmatpush1.bf16.msra.mxu0 %v913
      %967 = vmatprep.subr.bf16.mxu0 0
      %968 = vmatpush1.bf16.msra.mxu0 %v914
      %969 = vmatprep.subr.bf16.mxu0 0
      %970 = vmatpush1.bf16.msra.mxu0 0
      %971 = vmatprep.subr.bf16.mxu0 0
      %972 = vmatpush1.bf16.msra.mxu0 0
      %973 = vmatprep.subr.bf16.mxu0 0
      %974 = vmatpush1.bf16.msra.mxu0 0
      %975 = vmatprep.subr.bf16.mxu0 0
      %976 = vmatpush1.bf16.msra.mxu0 0
      %977 = vmatprep.subr.bf16.mxu0 0
      %978 = vmatpush1.bf16.msra.mxu0 0
      %979 = vmatprep.subr.bf16.mxu0 0
      %980 = vmatpush1.bf16.msra.mxu0 0
      %981 = vmatprep.subr.bf16.mxu0 0
      %982 = vmatpush1.bf16.msra.mxu0 0
      %983 = vmatprep.subr.bf16.mxu0 0
      %984 = vmatpush1.bf16.msra.mxu0 0
      %985 = vmatprep.subr.bf16.mxu0 0
      %986 = vmatpush1.bf16.msra.mxu0 0
      %987 = vmatprep.subr.bf16.mxu0 0
      %988 = vmatpush1.bf16.msra.mxu0 0
      %989 = vmatprep.subr.bf16.mxu0 0
      %990 = vmatpush1.bf16.msra.mxu0 0
      %991 = vmatprep.subr.bf16.mxu0 0
      %992 = vmatpush1.bf16.msra.mxu0 0
      %993 = vmatprep.subr.bf16.mxu0 0
      %994 = vmatpush1.bf16.msra.mxu0 0
      %995 = vmatprep.subr.bf16.mxu0 0
      %996 = vmatpush1.bf16.msra.mxu0 0
      %997 = vmatprep.mubr.bf16.mxu0 0
      %998 = vmatmul.mubr.bf16.gmra.mrb[0].mxu0 %v918
      %v999 = vpop.f32.mrb[0].mxu0
      %v1000 = vadd.f32 0.0, %v999
      %v1001 = vpop.f32.mrb[0].mxu0
      %v1002 = vpop.f32.mrb[0].mxu0
      %v1003 = vadd.f32 0.0, %v1002
      %v1004 = vpop.f32.mrb[0].mxu0
      %1005 = vmatprep.mubr.bf16.mxu0 0
      %1006 = vmatmul.mubr.bf16.gmra.mrb[0].mxu0 %v921
      %v1007 = vpop.f32.mrb[0].mxu0
      %v1008 = vadd.f32 0.0, %v1007
      %v1009 = vpop.f32.mrb[0].mxu0
      %v1010 = vpop.f32.mrb[0].mxu0
      %v1011 = vadd.f32 0.0, %v1010
      %v1012 = vpop.f32.mrb[0].mxu0
      %1013 = vmatprep.mubr.bf16.mxu0 0
      %1014 = vmatmul.mubr.bf16.gmra.mrb[0].mxu0 %v924
      %v1015 = vpop.f32.mrb[0].mxu0
      %v1016 = vadd.f32 0.0, %v1015
      %v1017 = vpop.f32.mrb[0].mxu0
      %v1018 = vpop.f32.mrb[0].mxu0
      %v1019 = vadd.f32 0.0, %v1018
      %v1020 = vpop.f32.mrb[0].mxu0
      %1021 = vmatprep.mubr.bf16.mxu0 0
      %1022 = vmatmul.mubr.bf16.gmra.mrb[0].mxu0 %v927
      %v1023 = vpop.f32.mrb[0].mxu0
      %v1024 = vadd.f32 0.0, %v1023
      %v1025 = vpop.f32.mrb[0].mxu0
      %v1026 = vpop.f32.mrb[0].mxu0
      %v1027 = vadd.f32 0.0, %v1026
      %v1028 = vpop.f32.mrb[0].mxu0
      %1029 = vmatprep.mubr.bf16.mxu0 0
      %1030 = vmatmul.mubr.bf16.gmra.mrb[0].mxu0 %v930
      %v1031 = vpop.f32.mrb[0].mxu0
      %v1032 = vadd.f32 0.0, %v1031
      %v1033 = vpop.f32.mrb[0].mxu0
      %v1034 = vpop.f32.mrb[0].mxu0
      %v1035 = vadd.f32 0.0, %v1034
      %v1036 = vpop.f32.mrb[0].mxu0
      %1037 = vmatprep.mubr.bf16.mxu0 0
      %1038 = vmatmul.mubr.bf16.gmra.mrb[0].mxu0 %v933
      %v1039 = vpop.f32.mrb[0].mxu0
      %v1040 = vadd.f32 0.0, %v1039
      %v1041 = vpop.f32.mrb[0].mxu0
      %v1042 = vpop.f32.mrb[0].mxu0
      %v1043 = vadd.f32 0.0, %v1042
      %v1044 = vpop.f32.mrb[0].mxu0
      %1045 = vmatprep.mubr.bf16.mxu0 0
      %1046 = vmatmul.mubr.bf16.gmra.mrb[0].mxu0 %v936
      %v1047 = vpop.f32.mrb[0].mxu0
      %v1048 = vadd.f32 0.0, %v1047
      %v1049 = vpop.f32.mrb[0].mxu0
      %v1050 = vpop.f32.mrb[0].mxu0
      %v1051 = vadd.f32 0.0, %v1050
      %v1052 = vpop.f32.mrb[0].mxu0
      %1053 = vmatprep.mubr.bf16.mxu0 0
      %1054 = vmatmul.mubr.bf16.gmra.mrb[0].mxu0 %v939
      %v1055 = vpop.f32.mrb[0].mxu0
      %v1056 = vadd.f32 0.0, %v1055
      %v1057 = vpop.f32.mrb[0].mxu0
      %v1058 = vpop.f32.mrb[0].mxu0
      %v1059 = vadd.f32 0.0, %v1058
      %v1060 = vpop.f32.mrb[0].mxu0
      %1061 = vmatprep.mubr.bf16.mxu0 0
      %1062 = vmatmul.mubr.bf16.gmra.mrb[0].mxu0 %v942
      %v1063 = vpop.f32.mrb[0].mxu0
      %v1064 = vadd.f32 0.0, %v1063
      %v1065 = vpop.f32.mrb[0].mxu0
      %v1066 = vpop.f32.mrb[0].mxu0
      %v1067 = vadd.f32 0.0, %v1066
      %v1068 = vpop.f32.mrb[0].mxu0
      %1069 = vmatprep.mubr.bf16.mxu0 0
      %1070 = vmatmul.mubr.bf16.gmra.mrb[0].mxu0 %v945
      %v1071 = vpop.f32.mrb[0].mxu0
      %v1072 = vadd.f32 0.0, %v1071
      %v1073 = vpop.f32.mrb[0].mxu0
      %v1074 = vpop.f32.mrb[0].mxu0
      %v1075 = vadd.f32 0.0, %v1074
      %v1076 = vpop.f32.mrb[0].mxu0
      %1077 = vmatprep.mubr.bf16.mxu0 0
      %1078 = vmatmul.mubr.bf16.gmra.mrb[0].mxu0 %v948
      %v1079 = vpop.f32.mrb[0].mxu0
      %v1080 = vadd.f32 0.0, %v1079
      %v1081 = vpop.f32.mrb[0].mxu0
      %v1082 = vpop.f32.mrb[0].mxu0
      %v1083 = vadd.f32 0.0, %v1082
      %v1084 = vpop.f32.mrb[0].mxu0
      %1085 = vmatprep.mubr.bf16.mxu0 0
      %1086 = vmatmul.mubr.bf16.gmra.mrb[0].mxu0 %v951
      %v1087 = vpop.f32.mrb[0].mxu0
      %v1088 = vadd.f32 0.0, %v1087
      %v1089 = vpop.f32.mrb[0].mxu0
      %v1090 = vpop.f32.mrb[0].mxu0
      %v1091 = vadd.f32 0.0, %v1090
      %v1092 = vpop.f32.mrb[0].mxu0
      %1093 = vmatprep.mubr.bf16.mxu0 0
      %1094 = vmatmul.mubr.bf16.gmra.mrb[0].mxu0 %v954
      %v1095 = vpop.f32.mrb[0].mxu0
      %v1096 = vadd.f32 0.0, %v1095
      %v1097 = vpop.f32.mrb[0].mxu0
      %v1098 = vpop.f32.mrb[0].mxu0
      %v1099 = vadd.f32 0.0, %v1098
      %v1100 = vpop.f32.mrb[0].mxu0
      %1101 = vmatprep.mubr.bf16.mxu0 0
      %1102 = vmatmul.mubr.bf16.gmra.mrb[0].mxu0 %v957
      %v1103 = vpop.f32.mrb[0].mxu0
      %v1104 = vadd.f32 0.0, %v1103
      %v1105 = vpop.f32.mrb[0].mxu0
      %v1106 = vpop.f32.mrb[0].mxu0
      %v1107 = vadd.f32 0.0, %v1106
      %v1108 = vpop.f32.mrb[0].mxu0
      %1109 = vmatprep.mubr.bf16.mxu0 0
      %1110 = vmatmul.mubr.bf16.gmra.mrb[0].mxu0 %v960
      %v1111 = vpop.f32.mrb[0].mxu0
      %v1112 = vadd.f32 0.0, %v1111
      %v1113 = vpop.f32.mrb[0].mxu0
      %v1114 = vpop.f32.mrb[0].mxu0
      %v1115 = vadd.f32 0.0, %v1114
      %v1116 = vpop.f32.mrb[0].mxu0
      %1117 = vmatprep.mubr.bf16.mxu0 0
      %1118 = vmatmul.mubr.bf16.gmra.mrb[0].mxu0 %v963
      %v1119 = vpop.f32.mrb[0].mxu0
      %v1120 = vadd.f32 0.0, %v1119
      %v1121 = vpop.f32.mrb[0].mxu0
      %v1122 = vpop.f32.mrb[0].mxu0
      %v1123 = vadd.f32 0.0, %v1122
      %v1124 = vpop.f32.mrb[0].mxu0
      %1125 = vdwg.mxu0
      %v1126 = vpack.c.bf16 %v1003, %v1000
      %v1127 = vpack.c.bf16 %v1011, %v1008
      %v1128 = vpack.c.bf16 %v1019, %v1016
      %v1129 = vpack.c.bf16 %v1027, %v1024
      %v1130 = vpack.c.bf16 %v1035, %v1032
      %v1131 = vpack.c.bf16 %v1043, %v1040
      %v1132 = vpack.c.bf16 %v1051, %v1048
      %v1133 = vpack.c.bf16 %v1059, %v1056
      %v1134 = vpack.c.bf16 %v1067, %v1064
      %v1135 = vpack.c.bf16 %v1075, %v1072
      %v1136 = vpack.c.bf16 %v1083, %v1080
      %v1137 = vpack.c.bf16 %v1091, %v1088
      %v1138 = vpack.c.bf16 %v1099, %v1096
      %v1139 = vpack.c.bf16 %v1107, %v1104
      %v1140 = vpack.c.bf16 %v1115, %v1112
      %v1141 = vpack.c.bf16 %v1123, %v1120
      %s1142 = scalar_lea.vmem %s3, 1
      %v1143 = vld [vmem:[%s1142] sm:$0x1]
      %v1145 = vlaneseq
      %v1146 = vshrl.u32 %v1145, 7
      %v1147 = vsub.s32 0, %v1146
      %v1148 = vrot.slane %v1143, %v1147
      %1150 = vmatprep.subr.bf16.mxu0 0
      %1151 = vmatpush1.bf16.msra.mxu0 %v1126
      %1152 = vmatprep.subr.bf16.mxu0 0
      %1153 = vmatpush1.bf16.msra.mxu0 %v1127
      %1154 = vmatprep.subr.bf16.mxu0 0
      %1155 = vmatpush1.bf16.msra.mxu0 %v1128
      %1156 = vmatprep.subr.bf16.mxu0 0
      %1157 = vmatpush1.bf16.msra.mxu0 %v1129
      %1158 = vmatprep.subr.bf16.mxu0 0
      %1159 = vmatpush1.bf16.msra.mxu0 %v1130
      %1160 = vmatprep.subr.bf16.mxu0 0
      %1161 = vmatpush1.bf16.msra.mxu0 %v1131
      %1162 = vmatprep.subr.bf16.mxu0 0
      %1163 = vmatpush1.bf16.msra.mxu0 %v1132
      %1164 = vmatprep.subr.bf16.mxu0 0
      %1165 = vmatpush1.bf16.msra.mxu0 %v1133
      %1166 = vmatprep.subr.bf16.mxu0 0
      %1167 = vmatpush1.bf16.msra.mxu0 %v1134
      %1168 = vmatprep.subr.bf16.mxu0 0
      %1169 = vmatpush1.bf16.msra.mxu0 %v1135
      %1170 = vmatprep.subr.bf16.mxu0 0
      %1171 = vmatpush1.bf16.msra.mxu0 %v1136
      %1172 = vmatprep.subr.bf16.mxu0 0
      %1173 = vmatpush1.bf16.msra.mxu0 %v1137
      %1174 = vmatprep.subr.bf16.mxu0 0
      %1175 = vmatpush1.bf16.msra.mxu0 %v1138
      %1176 = vmatprep.subr.bf16.mxu0 0
      %1177 = vmatpush1.bf16.msra.mxu0 %v1139
      %1178 = vmatprep.subr.bf16.mxu0 0
      %1179 = vmatpush1.bf16.msra.mxu0 %v1140
      %1180 = vmatprep.subr.bf16.mxu0 0
      %1181 = vmatpush1.bf16.msra.mxu0 %v1141
      %1182 = vmatprep.mubr.bf16.mxu0 %v628
      %1183 = vmatmul.mubr.bf16.gmra.mrb[0].mxu0 %v627
      %v1184 = vpop.f32.mrb[0].mxu0
      %v1185 = vadd.f32 %v1148, %v1184
      %v1186 = vpop.f32.mrb[0].mxu0
      %v1187 = vpop.f32.mrb[0].mxu0
      %v1188 = vadd.f32 %v1148, %v1187
      %v1189 = vpop.f32.mrb[0].mxu0
      %1190 = vmatprep.mubr.bf16.mxu0 %v630
      %1191 = vmatmul.mubr.bf16.gmra.mrb[0].mxu0 %v629
      %v1192 = vpop.f32.mrb[0].mxu0
      %v1193 = vadd.f32 %v1148, %v1192
      %v1194 = vpop.f32.mrb[0].mxu0
      %v1195 = vpop.f32.mrb[0].mxu0
      %v1196 = vadd.f32 %v1148, %v1195
      %v1197 = vpop.f32.mrb[0].mxu0
      %1198 = vmatprep.mubr.bf16.mxu0 %v632
      %1199 = vmatmul.mubr.bf16.gmra.mrb[0].mxu0 %v631
      %v1200 = vpop.f32.mrb[0].mxu0
      %v1201 = vadd.f32 %v1148, %v1200
      %v1202 = vpop.f32.mrb[0].mxu0
      %v1203 = vpop.f32.mrb[0].mxu0
      %v1204 = vadd.f32 %v1148, %v1203
      %v1205 = vpop.f32.mrb[0].mxu0
      %1206 = vmatprep.mubr.bf16.mxu0 %v634
      %1207 = vmatmul.mubr.bf16.gmra.mrb[0].mxu0 %v633
      %v1208 = vpop.f32.mrb[0].mxu0
      %v1209 = vadd.f32 %v1148, %v1208
      %v1210 = vpop.f32.mrb[0].mxu0
      %v1211 = vpop.f32.mrb[0].mxu0
      %v1212 = vadd.f32 %v1148, %v1211
      %v1213 = vpop.f32.mrb[0].mxu0
      %1214 = vmatprep.mubr.bf16.mxu0 %v636
      %1215 = vmatmul.mubr.bf16.gmra.mrb[0].mxu0 %v635
      %v1216 = vpop.f32.mrb[0].mxu0
      %v1217 = vadd.f32 %v1148, %v1216
      %v1218 = vpop.f32.mrb[0].mxu0
      %v1219 = vpop.f32.mrb[0].mxu0
      %v1220 = vadd.f32 %v1148, %v1219
      %v1221 = vpop.f32.mrb[0].mxu0
      %1222 = vmatprep.mubr.bf16.mxu0 %v638
      %1223 = vmatmul.mubr.bf16.gmra.mrb[0].mxu0 %v637
      %v1224 = vpop.f32.mrb[0].mxu0
      %v1225 = vadd.f32 %v1148, %v1224
      %v1226 = vpop.f32.mrb[0].mxu0
      %v1227 = vpop.f32.mrb[0].mxu0
      %v1228 = vadd.f32 %v1148, %v1227
      %v1229 = vpop.f32.mrb[0].mxu0
      %1230 = vmatprep.mubr.bf16.mxu0 %v640
      %1231 = vmatmul.mubr.bf16.gmra.mrb[0].mxu0 %v639
      %v1232 = vpop.f32.mrb[0].mxu0
      %v1233 = vadd.f32 %v1148, %v1232
      %v1234 = vpop.f32.mrb[0].mxu0
      %v1235 = vpop.f32.mrb[0].mxu0
      %v1236 = vadd.f32 %v1148, %v1235
      %v1237 = vpop.f32.mrb[0].mxu0
      %1238 = vmatprep.mubr.bf16.mxu0 %v642
      %1239 = vmatmul.mubr.bf16.gmra.mrb[0].mxu0 %v641
      %v1240 = vpop.f32.mrb[0].mxu0
      %v1241 = vadd.f32 %v1148, %v1240
      %v1242 = vpop.f32.mrb[0].mxu0
      %v1243 = vpop.f32.mrb[0].mxu0
      %v1244 = vadd.f32 %v1148, %v1243
      %v1245 = vpop.f32.mrb[0].mxu0
      %1246 = vmatprep.mubr.bf16.mxu0 %v644
      %1247 = vmatmul.mubr.bf16.gmra.mrb[0].mxu0 %v643
      %v1248 = vpop.f32.mrb[0].mxu0
      %v1249 = vadd.f32 %v1148, %v1248
      %v1250 = vpop.f32.mrb[0].mxu0
      %v1251 = vpop.f32.mrb[0].mxu0
      %v1252 = vadd.f32 %v1148, %v1251
      %v1253 = vpop.f32.mrb[0].mxu0
      %1254 = vmatprep.mubr.bf16.mxu0 %v646
      %1255 = vmatmul.mubr.bf16.gmra.mrb[0].mxu0 %v645
      %v1256 = vpop.f32.mrb[0].mxu0
      %v1257 = vadd.f32 %v1148, %v1256
      %v1258 = vpop.f32.mrb[0].mxu0
      %v1259 = vpop.f32.mrb[0].mxu0
      %v1260 = vadd.f32 %v1148, %v1259
      %v1261 = vpop.f32.mrb[0].mxu0
      %1262 = vmatprep.mubr.bf16.mxu0 %v648
      %1263 = vmatmul.mubr.bf16.gmra.mrb[0].mxu0 %v647
      %v1264 = vpop.f32.mrb[0].mxu0
      %v1265 = vadd.f32 %v1148, %v1264
      %v1266 = vpop.f32.mrb[0].mxu0
      %v1267 = vpop.f32.mrb[0].mxu0
      %v1268 = vadd.f32 %v1148, %v1267
      %v1269 = vpop.f32.mrb[0].mxu0
      %1270 = vmatprep.mubr.bf16.mxu0 %v650
      %1271 = vmatmul.mubr.bf16.gmra.mrb[0].mxu0 %v649
      %v1272 = vpop.f32.mrb[0].mxu0
      %v1273 = vadd.f32 %v1148, %v1272
      %v1274 = vpop.f32.mrb[0].mxu0
      %v1275 = vpop.f32.mrb[0].mxu0
      %v1276 = vadd.f32 %v1148, %v1275
      %v1277 = vpop.f32.mrb[0].mxu0
      %1278 = vmatprep.mubr.bf16.mxu0 %v652
      %1279 = vmatmul.mubr.bf16.gmra.mrb[0].mxu0 %v651
      %v1280 = vpop.f32.mrb[0].mxu0
      %v1281 = vadd.f32 %v1148, %v1280
      %v1282 = vpop.f32.mrb[0].mxu0
      %v1283 = vpop.f32.mrb[0].mxu0
      %v1284 = vadd.f32 %v1148, %v1283
      %v1285 = vpop.f32.mrb[0].mxu0
      %1286 = vmatprep.mubr.bf16.mxu0 %v654
      %1287 = vmatmul.mubr.bf16.gmra.mrb[0].mxu0 %v653
      %v1288 = vpop.f32.mrb[0].mxu0
      %v1289 = vadd.f32 %v1148, %v1288
      %v1290 = vpop.f32.mrb[0].mxu0
      %v1291 = vpop.f32.mrb[0].mxu0
      %v1292 = vadd.f32 %v1148, %v1291
      %v1293 = vpop.f32.mrb[0].mxu0
      %1294 = vmatprep.mubr.bf16.mxu0 %v656
      %1295 = vmatmul.mubr.bf16.gmra.mrb[0].mxu0 %v655
      %v1296 = vpop.f32.mrb[0].mxu0
      %v1297 = vadd.f32 %v1148, %v1296
      %v1298 = vpop.f32.mrb[0].mxu0
      %v1299 = vpop.f32.mrb[0].mxu0
      %v1300 = vadd.f32 %v1148, %v1299
      %v1301 = vpop.f32.mrb[0].mxu0
      %1302 = vmatprep.mubr.bf16.mxu0 %v658
      %1303 = vmatmul.mubr.bf16.gmra.mrb[0].mxu0 %v657
      %v1304 = vpop.f32.mrb[0].mxu0
      %v1305 = vadd.f32 %v1148, %v1304
      %v1306 = vpop.f32.mrb[0].mxu0
      %v1307 = vpop.f32.mrb[0].mxu0
      %v1308 = vadd.f32 %v1148, %v1307
      %v1309 = vpop.f32.mrb[0].mxu0
      %1310 = vdwg.mxu0
      %v1311 = vmax.f32 %v1185, 0.0
      %v1312 = vmax.f32 %v1188, 0.0
      %v1313 = vmax.f32 %v1193, 0.0
      %v1314 = vmax.f32 %v1196, 0.0
      %v1315 = vmax.f32 %v1201, 0.0
      %v1316 = vmax.f32 %v1204, 0.0
      %v1317 = vmax.f32 %v1209, 0.0
      %v1318 = vmax.f32 %v1212, 0.0
      %v1319 = vmax.f32 %v1217, 0.0
      %v1320 = vmax.f32 %v1220, 0.0
      %v1321 = vmax.f32 %v1225, 0.0
      %v1322 = vmax.f32 %v1228, 0.0
      %v1323 = vmax.f32 %v1233, 0.0
      %v1324 = vmax.f32 %v1236, 0.0
      %v1325 = vmax.f32 %v1241, 0.0
      %v1326 = vmax.f32 %v1244, 0.0
      %v1327 = vmax.f32 %v1249, 0.0
      %v1328 = vmax.f32 %v1252, 0.0
      %v1329 = vmax.f32 %v1257, 0.0
      %v1330 = vmax.f32 %v1260, 0.0
      %v1331 = vmax.f32 %v1265, 0.0
      %v1332 = vmax.f32 %v1268, 0.0
      %v1333 = vmax.f32 %v1273, 0.0
      %v1334 = vmax.f32 %v1276, 0.0
      %v1335 = vmax.f32 %v1281, 0.0
      %v1336 = vmax.f32 %v1284, 0.0
      %v1337 = vmax.f32 %v1289, 0.0
      %v1338 = vmax.f32 %v1292, 0.0
      %v1339 = vmax.f32 %v1297, 0.0
      %v1340 = vmax.f32 %v1300, 0.0
      %v1341 = vmax.f32 %v1305, 0.0
      %v1342 = vmax.f32 %v1308, 0.0
      %v1343 = vpack.c.bf16 %v1312, %v1311
      %v1344 = vpack.c.bf16 %v1314, %v1313
      %v1345 = vpack.c.bf16 %v1316, %v1315
      %v1346 = vpack.c.bf16 %v1318, %v1317
      %v1347 = vpack.c.bf16 %v1320, %v1319
      %v1348 = vpack.c.bf16 %v1322, %v1321
      %v1349 = vpack.c.bf16 %v1324, %v1323
      %v1350 = vpack.c.bf16 %v1326, %v1325
      %v1351 = vpack.c.bf16 %v1328, %v1327
      %v1352 = vpack.c.bf16 %v1330, %v1329
      %v1353 = vpack.c.bf16 %v1332, %v1331
      %v1354 = vpack.c.bf16 %v1334, %v1333
      %v1355 = vpack.c.bf16 %v1336, %v1335
      %v1356 = vpack.c.bf16 %v1338, %v1337
      %v1357 = vpack.c.bf16 %v1340, %v1339
      %v1358 = vpack.c.bf16 %v1342, %v1341
      %s1359 = scalar_lea.vmem %s2, 32
      %v1360 = vld [vmem:[%s1359] sm:$0xf]
      %v1361 = vld [vmem:[%s1359 + $0x4] sm:$0xf]
      %v1362 = vld [vmem:[%s1359 + $0x8] sm:$0xf]
      %v1363 = vld [vmem:[%s1359 + $0xc] sm:$0xf]
      %v1368 = vunpack.c.l.b16 %v1360
      %v1369 = vunpack.c.l.b16 %v1361
      %v1370 = vunpack.c.l.b16 %v1362
      %v1371 = vunpack.c.l.b16 %v1363
      %v1372 = vpack.c.b16 %v1369, %v1368
      %v1373 = vpack.c.b16 %v1371, %v1370
      %v1377 = vsel %vm298, %v1343, 0
      %v1380 = vsel %vm298, %v1344, 0
      %v1383 = vsel %vm298, %v1345, 0
      %v1386 = vsel %vm298, %v1346, 0
      %v1389 = vsel %vm298, %v1347, 0
      %v1392 = vsel %vm298, %v1348, 0
      %v1395 = vsel %vm298, %v1349, 0
      %v1398 = vsel %vm298, %v1350, 0
      %v1401 = vsel %vm298, %v1351, 0
      %v1404 = vsel %vm298, %v1352, 0
      %v1407 = vsel %vm298, %v1353, 0
      %v1410 = vsel %vm298, %v1354, 0
      %v1413 = vsel %vm298, %v1355, 0
      %v1416 = vsel %vm298, %v1356, 0
      %v1419 = vsel %vm298, %v1357, 0
      %v1422 = vsel %vm298, %v1358, 0
      %1424 = vmatprep.subr.bf16.mxu0 0
      %1425 = vmatpush1.bf16.msra.mxu0 %v1372
      %1426 = vmatprep.subr.bf16.mxu0 0
      %1427 = vmatpush1.bf16.msra.mxu0 %v1373
      %1428 = vmatprep.subr.bf16.mxu0 0
      %1429 = vmatpush1.bf16.msra.mxu0 0
      %1430 = vmatprep.subr.bf16.mxu0 0
      %1431 = vmatpush1.bf16.msra.mxu0 0
      %1432 = vmatprep.subr.bf16.mxu0 0
      %1433 = vmatpush1.bf16.msra.mxu0 0
      %1434 = vmatprep.subr.bf16.mxu0 0
      %1435 = vmatpush1.bf16.msra.mxu0 0
      %1436 = vmatprep.subr.bf16.mxu0 0
      %1437 = vmatpush1.bf16.msra.mxu0 0
      %1438 = vmatprep.subr.bf16.mxu0 0
      %1439 = vmatpush1.bf16.msra.mxu0 0
      %1440 = vmatprep.subr.bf16.mxu0 0
      %1441 = vmatpush1.bf16.msra.mxu0 0
      %1442 = vmatprep.subr.bf16.mxu0 0
      %1443 = vmatpush1.bf16.msra.mxu0 0
      %1444 = vmatprep.subr.bf16.mxu0 0
      %1445 = vmatpush1.bf16.msra.mxu0 0
      %1446 = vmatprep.subr.bf16.mxu0 0
      %1447 = vmatpush1.bf16.msra.mxu0 0
      %1448 = vmatprep.subr.bf16.mxu0 0
      %1449 = vmatpush1.bf16.msra.mxu0 0
      %1450 = vmatprep.subr.bf16.mxu0 0
      %1451 = vmatpush1.bf16.msra.mxu0 0
      %1452 = vmatprep.subr.bf16.mxu0 0
      %1453 = vmatpush1.bf16.msra.mxu0 0
      %1454 = vmatprep.subr.bf16.mxu0 0
      %1455 = vmatpush1.bf16.msra.mxu0 0
      %1456 = vmatprep.mubr.bf16.mxu0 0
      %1457 = vmatmul.mubr.bf16.gmra.mrb[0].mxu0 %v1377
      %v1458 = vpop.f32.mrb[0].mxu0
      %v1459 = vadd.f32 0.0, %v1458
      %v1460 = vpop.f32.mrb[0].mxu0
      %v1461 = vpop.f32.mrb[0].mxu0
      %v1462 = vadd.f32 0.0, %v1461
      %v1463 = vpop.f32.mrb[0].mxu0
      %1464 = vmatprep.mubr.bf16.mxu0 0
      %1465 = vmatmul.mubr.bf16.gmra.mrb[0].mxu0 %v1380
      %v1466 = vpop.f32.mrb[0].mxu0
      %v1467 = vadd.f32 0.0, %v1466
      %v1468 = vpop.f32.mrb[0].mxu0
      %v1469 = vpop.f32.mrb[0].mxu0
      %v1470 = vadd.f32 0.0, %v1469
      %v1471 = vpop.f32.mrb[0].mxu0
      %1472 = vmatprep.mubr.bf16.mxu0 0
      %1473 = vmatmul.mubr.bf16.gmra.mrb[0].mxu0 %v1383
      %v1474 = vpop.f32.mrb[0].mxu0
      %v1475 = vadd.f32 0.0, %v1474
      %v1476 = vpop.f32.mrb[0].mxu0
      %v1477 = vpop.f32.mrb[0].mxu0
      %v1478 = vadd.f32 0.0, %v1477
      %v1479 = vpop.f32.mrb[0].mxu0
      %1480 = vmatprep.mubr.bf16.mxu0 0
      %1481 = vmatmul.mubr.bf16.gmra.mrb[0].mxu0 %v1386
      %v1482 = vpop.f32.mrb[0].mxu0
      %v1483 = vadd.f32 0.0, %v1482
      %v1484 = vpop.f32.mrb[0].mxu0
      %v1485 = vpop.f32.mrb[0].mxu0
      %v1486 = vadd.f32 0.0, %v1485
      %v1487 = vpop.f32.mrb[0].mxu0
      %1488 = vmatprep.mubr.bf16.mxu0 0
      %1489 = vmatmul.mubr.bf16.gmra.mrb[0].mxu0 %v1389
      %v1490 = vpop.f32.mrb[0].mxu0
      %v1491 = vadd.f32 0.0, %v1490
      %v1492 = vpop.f32.mrb[0].mxu0
      %v1493 = vpop.f32.mrb[0].mxu0
      %v1494 = vadd.f32 0.0, %v1493
      %v1495 = vpop.f32.mrb[0].mxu0
      %1496 = vmatprep.mubr.bf16.mxu0 0
      %1497 = vmatmul.mubr.bf16.gmra.mrb[0].mxu0 %v1392
      %v1498 = vpop.f32.mrb[0].mxu0
      %v1499 = vadd.f32 0.0, %v1498
      %v1500 = vpop.f32.mrb[0].mxu0
      %v1501 = vpop.f32.mrb[0].mxu0
      %v1502 = vadd.f32 0.0, %v1501
      %v1503 = vpop.f32.mrb[0].mxu0
      %1504 = vmatprep.mubr.bf16.mxu0 0
      %1505 = vmatmul.mubr.bf16.gmra.mrb[0].mxu0 %v1395
      %v1506 = vpop.f32.mrb[0].mxu0
      %v1507 = vadd.f32 0.0, %v1506
      %v1508 = vpop.f32.mrb[0].mxu0
      %v1509 = vpop.f32.mrb[0].mxu0
      %v1510 = vadd.f32 0.0, %v1509
      %v1511 = vpop.f32.mrb[0].mxu0
      %1512 = vmatprep.mubr.bf16.mxu0 0
      %1513 = vmatmul.mubr.bf16.gmra.mrb[0].mxu0 %v1398
      %v1514 = vpop.f32.mrb[0].mxu0
      %v1515 = vadd.f32 0.0, %v1514
      %v1516 = vpop.f32.mrb[0].mxu0
      %v1517 = vpop.f32.mrb[0].mxu0
      %v1518 = vadd.f32 0.0, %v1517
      %v1519 = vpop.f32.mrb[0].mxu0
      %1520 = vmatprep.mubr.bf16.mxu0 0
      %1521 = vmatmul.mubr.bf16.gmra.mrb[0].mxu0 %v1401
      %v1522 = vpop.f32.mrb[0].mxu0
      %v1523 = vadd.f32 0.0, %v1522
      %v1524 = vpop.f32.mrb[0].mxu0
      %v1525 = vpop.f32.mrb[0].mxu0
      %v1526 = vadd.f32 0.0, %v1525
      %v1527 = vpop.f32.mrb[0].mxu0
      %1528 = vmatprep.mubr.bf16.mxu0 0
      %1529 = vmatmul.mubr.bf16.gmra.mrb[0].mxu0 %v1404
      %v1530 = vpop.f32.mrb[0].mxu0
      %v1531 = vadd.f32 0.0, %v1530
      %v1532 = vpop.f32.mrb[0].mxu0
      %v1533 = vpop.f32.mrb[0].mxu0
      %v1534 = vadd.f32 0.0, %v1533
      %v1535 = vpop.f32.mrb[0].mxu0
      %1536 = vmatprep.mubr.bf16.mxu0 0
      %1537 = vmatmul.mubr.bf16.gmra.mrb[0].mxu0 %v1407
      %v1538 = vpop.f32.mrb[0].mxu0
      %v1539 = vadd.f32 0.0, %v1538
      %v1540 = vpop.f32.mrb[0].mxu0
      %v1541 = vpop.f32.mrb[0].mxu0
      %v1542 = vadd.f32 0.0, %v1541
      %v1543 = vpop.f32.mrb[0].mxu0
      %1544 = vmatprep.mubr.bf16.mxu0 0
      %1545 = vmatmul.mubr.bf16.gmra.mrb[0].mxu0 %v1410
      %v1546 = vpop.f32.mrb[0].mxu0
      %v1547 = vadd.f32 0.0, %v1546
      %v1548 = vpop.f32.mrb[0].mxu0
      %v1549 = vpop.f32.mrb[0].mxu0
      %v1550 = vadd.f32 0.0, %v1549
      %v1551 = vpop.f32.mrb[0].mxu0
      %1552 = vmatprep.mubr.bf16.mxu0 0
      %1553 = vmatmul.mubr.bf16.gmra.mrb[0].mxu0 %v1413
      %v1554 = vpop.f32.mrb[0].mxu0
      %v1555 = vadd.f32 0.0, %v1554
      %v1556 = vpop.f32.mrb[0].mxu0
      %v1557 = vpop.f32.mrb[0].mxu0
      %v1558 = vadd.f32 0.0, %v1557
      %v1559 = vpop.f32.mrb[0].mxu0
      %1560 = vmatprep.mubr.bf16.mxu0 0
      %1561 = vmatmul.mubr.bf16.gmra.mrb[0].mxu0 %v1416
      %v1562 = vpop.f32.mrb[0].mxu0
      %v1563 = vadd.f32 0.0, %v1562
      %v1564 = vpop.f32.mrb[0].mxu0
      %v1565 = vpop.f32.mrb[0].mxu0
      %v1566 = vadd.f32 0.0, %v1565
      %v1567 = vpop.f32.mrb[0].mxu0
      %1568 = vmatprep.mubr.bf16.mxu0 0
      %1569 = vmatmul.mubr.bf16.gmra.mrb[0].mxu0 %v1419
      %v1570 = vpop.f32.mrb[0].mxu0
      %v1571 = vadd.f32 0.0, %v1570
      %v1572 = vpop.f32.mrb[0].mxu0
      %v1573 = vpop.f32.mrb[0].mxu0
      %v1574 = vadd.f32 0.0, %v1573
      %v1575 = vpop.f32.mrb[0].mxu0
      %1576 = vmatprep.mubr.bf16.mxu0 0
      %1577 = vmatmul.mubr.bf16.gmra.mrb[0].mxu0 %v1422
      %v1578 = vpop.f32.mrb[0].mxu0
      %v1579 = vadd.f32 0.0, %v1578
      %v1580 = vpop.f32.mrb[0].mxu0
      %v1581 = vpop.f32.mrb[0].mxu0
      %v1582 = vadd.f32 0.0, %v1581
      %v1583 = vpop.f32.mrb[0].mxu0
      %1584 = vdwg.mxu0
      %v1585 = vpack.c.bf16 %v1462, %v1459
      %v1586 = vpack.c.bf16 %v1470, %v1467
      %v1587 = vpack.c.bf16 %v1478, %v1475
      %v1588 = vpack.c.bf16 %v1486, %v1483
      %v1589 = vpack.c.bf16 %v1494, %v1491
      %v1590 = vpack.c.bf16 %v1502, %v1499
      %v1591 = vpack.c.bf16 %v1510, %v1507
      %v1592 = vpack.c.bf16 %v1518, %v1515
      %v1593 = vpack.c.bf16 %v1526, %v1523
      %v1594 = vpack.c.bf16 %v1534, %v1531
      %v1595 = vpack.c.bf16 %v1542, %v1539
      %v1596 = vpack.c.bf16 %v1550, %v1547
      %v1597 = vpack.c.bf16 %v1558, %v1555
      %v1598 = vpack.c.bf16 %v1566, %v1563
      %v1599 = vpack.c.bf16 %v1574, %v1571
      %v1600 = vpack.c.bf16 %v1582, %v1579
      %s1601 = scalar_lea.vmem %s3, 2
      %v1602 = vld [vmem:[%s1601] sm:$0x1]
      %v1604 = vlaneseq
      %v1605 = vshrl.u32 %v1604, 7
      %v1606 = vsub.s32 0, %v1605
      %v1607 = vrot.slane %v1602, %v1606
      %1609 = vmatprep.subr.bf16.mxu0 0
      %1610 = vmatpush1.bf16.msra.mxu0 %v1585
      %1611 = vmatprep.subr.bf16.mxu0 0
      %1612 = vmatpush1.bf16.msra.mxu0 %v1586
      %1613 = vmatprep.subr.bf16.mxu0 0
      %1614 = vmatpush1.bf16.msra.mxu0 %v1587
      %1615 = vmatprep.subr.bf16.mxu0 0
      %1616 = vmatpush1.bf16.msra.mxu0 %v1588
      %1617 = vmatprep.subr.bf16.mxu0 0
      %1618 = vmatpush1.bf16.msra.mxu0 %v1589
      %1619 = vmatprep.subr.bf16.mxu0 0
      %1620 = vmatpush1.bf16.msra.mxu0 %v1590
      %1621 = vmatprep.subr.bf16.mxu0 0
      %1622 = vmatpush1.bf16.msra.mxu0 %v1591
      %1623 = vmatprep.subr.bf16.mxu0 0
      %1624 = vmatpush1.bf16.msra.mxu0 %v1592
      %1625 = vmatprep.subr.bf16.mxu0 0
      %1626 = vmatpush1.bf16.msra.mxu0 %v1593
      %1627 = vmatprep.subr.bf16.mxu0 0
      %1628 = vmatpush1.bf16.msra.mxu0 %v1594
      %1629 = vmatprep.subr.bf16.mxu0 0
      %1630 = vmatpush1.bf16.msra.mxu0 %v1595
      %1631 = vmatprep.subr.bf16.mxu0 0
      %1632 = vmatpush1.bf16.msra.mxu0 %v1596
      %1633 = vmatprep.subr.bf16.mxu0 0
      %1634 = vmatpush1.bf16.msra.mxu0 %v1597
      %1635 = vmatprep.subr.bf16.mxu0 0
      %1636 = vmatpush1.bf16.msra.mxu0 %v1598
      %1637 = vmatprep.subr.bf16.mxu0 0
      %1638 = vmatpush1.bf16.msra.mxu0 %v1599
      %1639 = vmatprep.subr.bf16.mxu0 0
      %1640 = vmatpush1.bf16.msra.mxu0 %v1600
      %1641 = vmatprep.mubr.bf16.mxu0 %v628
      %1642 = vmatmul.mubr.bf16.gmra.mrb[0].mxu0 %v627
      %v1643 = vpop.f32.mrb[0].mxu0
      %v1644 = vadd.f32 %v1607, %v1643
      %v1645 = vpop.f32.mrb[0].mxu0
      %v1646 = vpop.f32.mrb[0].mxu0
      %v1647 = vadd.f32 %v1607, %v1646
      %v1648 = vpop.f32.mrb[0].mxu0
      %1649 = vmatprep.mubr.bf16.mxu0 %v630
      %1650 = vmatmul.mubr.bf16.gmra.mrb[0].mxu0 %v629
      %v1651 = vpop.f32.mrb[0].mxu0
      %v1652 = vadd.f32 %v1607, %v1651
      %v1653 = vpop.f32.mrb[0].mxu0
      %v1654 = vpop.f32.mrb[0].mxu0
      %v1655 = vadd.f32 %v1607, %v1654
      %v1656 = vpop.f32.mrb[0].mxu0
      %1657 = vmatprep.mubr.bf16.mxu0 %v632
      %1658 = vmatmul.mubr.bf16.gmra.mrb[0].mxu0 %v631
      %v1659 = vpop.f32.mrb[0].mxu0
      %v1660 = vadd.f32 %v1607, %v1659
      %v1661 = vpop.f32.mrb[0].mxu0
      %v1662 = vpop.f32.mrb[0].mxu0
      %v1663 = vadd.f32 %v1607, %v1662
      %v1664 = vpop.f32.mrb[0].mxu0
      %1665 = vmatprep.mubr.bf16.mxu0 %v634
      %1666 = vmatmul.mubr.bf16.gmra.mrb[0].mxu0 %v633
      %v1667 = vpop.f32.mrb[0].mxu0
      %v1668 = vadd.f32 %v1607, %v1667
      %v1669 = vpop.f32.mrb[0].mxu0
      %v1670 = vpop.f32.mrb[0].mxu0
      %v1671 = vadd.f32 %v1607, %v1670
      %v1672 = vpop.f32.mrb[0].mxu0
      %1673 = vmatprep.mubr.bf16.mxu0 %v636
      %1674 = vmatmul.mubr.bf16.gmra.mrb[0].mxu0 %v635
      %v1675 = vpop.f32.mrb[0].mxu0
      %v1676 = vadd.f32 %v1607, %v1675
      %v1677 = vpop.f32.mrb[0].mxu0
      %v1678 = vpop.f32.mrb[0].mxu0
      %v1679 = vadd.f32 %v1607, %v1678
      %v1680 = vpop.f32.mrb[0].mxu0
      %1681 = vmatprep.mubr.bf16.mxu0 %v638
      %1682 = vmatmul.mubr.bf16.gmra.mrb[0].mxu0 %v637
      %v1683 = vpop.f32.mrb[0].mxu0
      %v1684 = vadd.f32 %v1607, %v1683
      %v1685 = vpop.f32.mrb[0].mxu0
      %v1686 = vpop.f32.mrb[0].mxu0
      %v1687 = vadd.f32 %v1607, %v1686
      %v1688 = vpop.f32.mrb[0].mxu0
      %1689 = vmatprep.mubr.bf16.mxu0 %v640
      %1690 = vmatmul.mubr.bf16.gmra.mrb[0].mxu0 %v639
      %v1691 = vpop.f32.mrb[0].mxu0
      %v1692 = vadd.f32 %v1607, %v1691
      %v1693 = vpop.f32.mrb[0].mxu0
      %v1694 = vpop.f32.mrb[0].mxu0
      %v1695 = vadd.f32 %v1607, %v1694
      %v1696 = vpop.f32.mrb[0].mxu0
      %1697 = vmatprep.mubr.bf16.mxu0 %v642
      %1698 = vmatmul.mubr.bf16.gmra.mrb[0].mxu0 %v641
      %v1699 = vpop.f32.mrb[0].mxu0
      %v1700 = vadd.f32 %v1607, %v1699
      %v1701 = vpop.f32.mrb[0].mxu0
      %v1702 = vpop.f32.mrb[0].mxu0
      %v1703 = vadd.f32 %v1607, %v1702
      %v1704 = vpop.f32.mrb[0].mxu0
      %1705 = vmatprep.mubr.bf16.mxu0 %v644
      %1706 = vmatmul.mubr.bf16.gmra.mrb[0].mxu0 %v643
      %v1707 = vpop.f32.mrb[0].mxu0
      %v1708 = vadd.f32 %v1607, %v1707
      %v1709 = vpop.f32.mrb[0].mxu0
      %v1710 = vpop.f32.mrb[0].mxu0
      %v1711 = vadd.f32 %v1607, %v1710
      %v1712 = vpop.f32.mrb[0].mxu0
      %1713 = vmatprep.mubr.bf16.mxu0 %v646
      %1714 = vmatmul.mubr.bf16.gmra.mrb[0].mxu0 %v645
      %v1715 = vpop.f32.mrb[0].mxu0
      %v1716 = vadd.f32 %v1607, %v1715
      %v1717 = vpop.f32.mrb[0].mxu0
      %v1718 = vpop.f32.mrb[0].mxu0
      %v1719 = vadd.f32 %v1607, %v1718
      %v1720 = vpop.f32.mrb[0].mxu0
      %1721 = vmatprep.mubr.bf16.mxu0 %v648
      %1722 = vmatmul.mubr.bf16.gmra.mrb[0].mxu0 %v647
      %v1723 = vpop.f32.mrb[0].mxu0
      %v1724 = vadd.f32 %v1607, %v1723
      %v1725 = vpop.f32.mrb[0].mxu0
      %v1726 = vpop.f32.mrb[0].mxu0
      %v1727 = vadd.f32 %v1607, %v1726
      %v1728 = vpop.f32.mrb[0].mxu0
      %1729 = vmatprep.mubr.bf16.mxu0 %v650
      %1730 = vmatmul.mubr.bf16.gmra.mrb[0].mxu0 %v649
      %v1731 = vpop.f32.mrb[0].mxu0
      %v1732 = vadd.f32 %v1607, %v1731
      %v1733 = vpop.f32.mrb[0].mxu0
      %v1734 = vpop.f32.mrb[0].mxu0
      %v1735 = vadd.f32 %v1607, %v1734
      %v1736 = vpop.f32.mrb[0].mxu0
      %1737 = vmatprep.mubr.bf16.mxu0 %v652
      %1738 = vmatmul.mubr.bf16.gmra.mrb[0].mxu0 %v651
      %v1739 = vpop.f32.mrb[0].mxu0
      %v1740 = vadd.f32 %v1607, %v1739
      %v1741 = vpop.f32.mrb[0].mxu0
      %v1742 = vpop.f32.mrb[0].mxu0
      %v1743 = vadd.f32 %v1607, %v1742
      %v1744 = vpop.f32.mrb[0].mxu0
      %1745 = vmatprep.mubr.bf16.mxu0 %v654
      %1746 = vmatmul.mubr.bf16.gmra.mrb[0].mxu0 %v653
      %v1747 = vpop.f32.mrb[0].mxu0
      %v1748 = vadd.f32 %v1607, %v1747
      %v1749 = vpop.f32.mrb[0].mxu0
      %v1750 = vpop.f32.mrb[0].mxu0
      %v1751 = vadd.f32 %v1607, %v1750
      %v1752 = vpop.f32.mrb[0].mxu0
      %1753 = vmatprep.mubr.bf16.mxu0 %v656
      %1754 = vmatmul.mubr.bf16.gmra.mrb[0].mxu0 %v655
      %v1755 = vpop.f32.mrb[0].mxu0
      %v1756 = vadd.f32 %v1607, %v1755
      %v1757 = vpop.f32.mrb[0].mxu0
      %v1758 = vpop.f32.mrb[0].mxu0
      %v1759 = vadd.f32 %v1607, %v1758
      %v1760 = vpop.f32.mrb[0].mxu0
      %1761 = vmatprep.mubr.bf16.mxu0 %v658
      %1762 = vmatmul.mubr.bf16.gmra.mrb[0].mxu0 %v657
      %v1763 = vpop.f32.mrb[0].mxu0
      %v1764 = vadd.f32 %v1607, %v1763
      %v1765 = vpop.f32.mrb[0].mxu0
      %v1766 = vpop.f32.mrb[0].mxu0
      %v1767 = vadd.f32 %v1607, %v1766
      %v1768 = vpop.f32.mrb[0].mxu0
      %1769 = vdwg.mxu0
      %v1770 = vmax.f32 %v1644, 0.0
      %v1771 = vmax.f32 %v1647, 0.0
      %v1772 = vmax.f32 %v1652, 0.0
      %v1773 = vmax.f32 %v1655, 0.0
      %v1774 = vmax.f32 %v1660, 0.0
      %v1775 = vmax.f32 %v1663, 0.0
      %v1776 = vmax.f32 %v1668, 0.0
      %v1777 = vmax.f32 %v1671, 0.0
      %v1778 = vmax.f32 %v1676, 0.0
      %v1779 = vmax.f32 %v1679, 0.0
      %v1780 = vmax.f32 %v1684, 0.0
      %v1781 = vmax.f32 %v1687, 0.0
      %v1782 = vmax.f32 %v1692, 0.0
      %v1783 = vmax.f32 %v1695, 0.0
      %v1784 = vmax.f32 %v1700, 0.0
      %v1785 = vmax.f32 %v1703, 0.0
      %v1786 = vmax.f32 %v1708, 0.0
      %v1787 = vmax.f32 %v1711, 0.0
      %v1788 = vmax.f32 %v1716, 0.0
      %v1789 = vmax.f32 %v1719, 0.0
      %v1790 = vmax.f32 %v1724, 0.0
      %v1791 = vmax.f32 %v1727, 0.0
      %v1792 = vmax.f32 %v1732, 0.0
      %v1793 = vmax.f32 %v1735, 0.0
      %v1794 = vmax.f32 %v1740, 0.0
      %v1795 = vmax.f32 %v1743, 0.0
      %v1796 = vmax.f32 %v1748, 0.0
      %v1797 = vmax.f32 %v1751, 0.0
      %v1798 = vmax.f32 %v1756, 0.0
      %v1799 = vmax.f32 %v1759, 0.0
      %v1800 = vmax.f32 %v1764, 0.0
      %v1801 = vmax.f32 %v1767, 0.0
      %v1802 = vpack.c.bf16 %v1771, %v1770
      %v1803 = vpack.c.bf16 %v1773, %v1772
      %v1804 = vpack.c.bf16 %v1775, %v1774
      %v1805 = vpack.c.bf16 %v1777, %v1776
      %v1806 = vpack.c.bf16 %v1779, %v1778
      %v1807 = vpack.c.bf16 %v1781, %v1780
      %v1808 = vpack.c.bf16 %v1783, %v1782
      %v1809 = vpack.c.bf16 %v1785, %v1784
      %v1810 = vpack.c.bf16 %v1787, %v1786
      %v1811 = vpack.c.bf16 %v1789, %v1788
      %v1812 = vpack.c.bf16 %v1791, %v1790
      %v1813 = vpack.c.bf16 %v1793, %v1792
      %v1814 = vpack.c.bf16 %v1795, %v1794
      %v1815 = vpack.c.bf16 %v1797, %v1796
      %v1816 = vpack.c.bf16 %v1799, %v1798
      %v1817 = vpack.c.bf16 %v1801, %v1800
      %s1818 = scalar_lea.vmem %s2, 48
      %v1819 = vld [vmem:[%s1818] sm:$0xf]
      %v1820 = vld [vmem:[%s1818 + $0x4] sm:$0xf]
      %v1821 = vld [vmem:[%s1818 + $0x8] sm:$0xf]
      %v1822 = vld [vmem:[%s1818 + $0xc] sm:$0xf]
      %v1827 = vunpack.c.l.b16 %v1819
      %v1828 = vunpack.c.l.b16 %v1820
      %v1829 = vunpack.c.l.b16 %v1821
      %v1830 = vunpack.c.l.b16 %v1822
      %v1831 = vpack.c.b16 %v1828, %v1827
      %v1832 = vpack.c.b16 %v1830, %v1829
      %v1836 = vsel %vm298, %v1802, 0
      %v1839 = vsel %vm298, %v1803, 0
      %v1842 = vsel %vm298, %v1804, 0
      %v1845 = vsel %vm298, %v1805, 0
      %v1848 = vsel %vm298, %v1806, 0
      %v1851 = vsel %vm298, %v1807, 0
      %v1854 = vsel %vm298, %v1808, 0
      %v1857 = vsel %vm298, %v1809, 0
      %v1860 = vsel %vm298, %v1810, 0
      %v1863 = vsel %vm298, %v1811, 0
      %v1866 = vsel %vm298, %v1812, 0
      %v1869 = vsel %vm298, %v1813, 0
      %v1872 = vsel %vm298, %v1814, 0
      %v1875 = vsel %vm298, %v1815, 0
      %v1878 = vsel %vm298, %v1816, 0
      %v1881 = vsel %vm298, %v1817, 0
      %1883 = vmatprep.subr.bf16.mxu0 0
      %1884 = vmatpush1.bf16.msra.mxu0 %v1831
      %1885 = vmatprep.subr.bf16.mxu0 0
      %1886 = vmatpush1.bf16.msra.mxu0 %v1832
      %1887 = vmatprep.subr.bf16.mxu0 0
      %1888 = vmatpush1.bf16.msra.mxu0 0
      %1889 = vmatprep.subr.bf16.mxu0 0
      %1890 = vmatpush1.bf16.msra.mxu0 0
      %1891 = vmatprep.subr.bf16.mxu0 0
      %1892 = vmatpush1.bf16.msra.mxu0 0
      %1893 = vmatprep.subr.bf16.mxu0 0
      %1894 = vmatpush1.bf16.msra.mxu0 0
      %1895 = vmatprep.subr.bf16.mxu0 0
      %1896 = vmatpush1.bf16.msra.mxu0 0
      %1897 = vmatprep.subr.bf16.mxu0 0
      %1898 = vmatpush1.bf16.msra.mxu0 0
      %1899 = vmatprep.subr.bf16.mxu0 0
      %1900 = vmatpush1.bf16.msra.mxu0 0
      %1901 = vmatprep.subr.bf16.mxu0 0
      %1902 = vmatpush1.bf16.msra.mxu0 0
      %1903 = vmatprep.subr.bf16.mxu0 0
      %1904 = vmatpush1.bf16.msra.mxu0 0
      %1905 = vmatprep.subr.bf16.mxu0 0
      %1906 = vmatpush1.bf16.msra.mxu0 0
      %1907 = vmatprep.subr.bf16.mxu0 0
      %1908 = vmatpush1.bf16.msra.mxu0 0
      %1909 = vmatprep.subr.bf16.mxu0 0
      %1910 = vmatpush1.bf16.msra.mxu0 0
      %1911 = vmatprep.subr.bf16.mxu0 0
      %1912 = vmatpush1.bf16.msra.mxu0 0
      %1913 = vmatprep.subr.bf16.mxu0 0
      %1914 = vmatpush1.bf16.msra.mxu0 0
      %1915 = vmatprep.mubr.bf16.mxu0 0
      %1916 = vmatmul.mubr.bf16.gmra.mrb[0].mxu0 %v1836
      %v1917 = vpop.f32.mrb[0].mxu0
      %v1918 = vadd.f32 0.0, %v1917
      %v1919 = vpop.f32.mrb[0].mxu0
      %v1920 = vpop.f32.mrb[0].mxu0
      %v1921 = vadd.f32 0.0, %v1920
      %v1922 = vpop.f32.mrb[0].mxu0
      %1923 = vmatprep.mubr.bf16.mxu0 0
      %1924 = vmatmul.mubr.bf16.gmra.mrb[0].mxu0 %v1839
      %v1925 = vpop.f32.mrb[0].mxu0
      %v1926 = vadd.f32 0.0, %v1925
      %v1927 = vpop.f32.mrb[0].mxu0
      %v1928 = vpop.f32.mrb[0].mxu0
      %v1929 = vadd.f32 0.0, %v1928
      %v1930 = vpop.f32.mrb[0].mxu0
      %1931 = vmatprep.mubr.bf16.mxu0 0
      %1932 = vmatmul.mubr.bf16.gmra.mrb[0].mxu0 %v1842
      %v1933 = vpop.f32.mrb[0].mxu0
      %v1934 = vadd.f32 0.0, %v1933
      %v1935 = vpop.f32.mrb[0].mxu0
      %v1936 = vpop.f32.mrb[0].mxu0
      %v1937 = vadd.f32 0.0, %v1936
      %v1938 = vpop.f32.mrb[0].mxu0
      %1939 = vmatprep.mubr.bf16.mxu0 0
      %1940 = vmatmul.mubr.bf16.gmra.mrb[0].mxu0 %v1845
      %v1941 = vpop.f32.mrb[0].mxu0
      %v1942 = vadd.f32 0.0, %v1941
      %v1943 = vpop.f32.mrb[0].mxu0
      %v1944 = vpop.f32.mrb[0].mxu0
      %v1945 = vadd.f32 0.0, %v1944
      %v1946 = vpop.f32.mrb[0].mxu0
      %1947 = vmatprep.mubr.bf16.mxu0 0
      %1948 = vmatmul.mubr.bf16.gmra.mrb[0].mxu0 %v1848
      %v1949 = vpop.f32.mrb[0].mxu0
      %v1950 = vadd.f32 0.0, %v1949
      %v1951 = vpop.f32.mrb[0].mxu0
      %v1952 = vpop.f32.mrb[0].mxu0
      %v1953 = vadd.f32 0.0, %v1952
      %v1954 = vpop.f32.mrb[0].mxu0
      %1955 = vmatprep.mubr.bf16.mxu0 0
      %1956 = vmatmul.mubr.bf16.gmra.mrb[0].mxu0 %v1851
      %v1957 = vpop.f32.mrb[0].mxu0
      %v1958 = vadd.f32 0.0, %v1957
      %v1959 = vpop.f32.mrb[0].mxu0
      %v1960 = vpop.f32.mrb[0].mxu0
      %v1961 = vadd.f32 0.0, %v1960
      %v1962 = vpop.f32.mrb[0].mxu0
      %1963 = vmatprep.mubr.bf16.mxu0 0
      %1964 = vmatmul.mubr.bf16.gmra.mrb[0].mxu0 %v1854
      %v1965 = vpop.f32.mrb[0].mxu0
      %v1966 = vadd.f32 0.0, %v1965
      %v1967 = vpop.f32.mrb[0].mxu0
      %v1968 = vpop.f32.mrb[0].mxu0
      %v1969 = vadd.f32 0.0, %v1968
      %v1970 = vpop.f32.mrb[0].mxu0
      %1971 = vmatprep.mubr.bf16.mxu0 0
      %1972 = vmatmul.mubr.bf16.gmra.mrb[0].mxu0 %v1857
      %v1973 = vpop.f32.mrb[0].mxu0
      %v1974 = vadd.f32 0.0, %v1973
      %v1975 = vpop.f32.mrb[0].mxu0
      %v1976 = vpop.f32.mrb[0].mxu0
      %v1977 = vadd.f32 0.0, %v1976
      %v1978 = vpop.f32.mrb[0].mxu0
      %1979 = vmatprep.mubr.bf16.mxu0 0
      %1980 = vmatmul.mubr.bf16.gmra.mrb[0].mxu0 %v1860
      %v1981 = vpop.f32.mrb[0].mxu0
      %v1982 = vadd.f32 0.0, %v1981
      %v1983 = vpop.f32.mrb[0].mxu0
      %v1984 = vpop.f32.mrb[0].mxu0
      %v1985 = vadd.f32 0.0, %v1984
      %v1986 = vpop.f32.mrb[0].mxu0
      %1987 = vmatprep.mubr.bf16.mxu0 0
      %1988 = vmatmul.mubr.bf16.gmra.mrb[0].mxu0 %v1863
      %v1989 = vpop.f32.mrb[0].mxu0
      %v1990 = vadd.f32 0.0, %v1989
      %v1991 = vpop.f32.mrb[0].mxu0
      %v1992 = vpop.f32.mrb[0].mxu0
      %v1993 = vadd.f32 0.0, %v1992
      %v1994 = vpop.f32.mrb[0].mxu0
      %1995 = vmatprep.mubr.bf16.mxu0 0
      %1996 = vmatmul.mubr.bf16.gmra.mrb[0].mxu0 %v1866
      %v1997 = vpop.f32.mrb[0].mxu0
      %v1998 = vadd.f32 0.0, %v1997
      %v1999 = vpop.f32.mrb[0].mxu0
      %v2000 = vpop.f32.mrb[0].mxu0
      %v2001 = vadd.f32 0.0, %v2000
      %v2002 = vpop.f32.mrb[0].mxu0
      %2003 = vmatprep.mubr.bf16.mxu0 0
      %2004 = vmatmul.mubr.bf16.gmra.mrb[0].mxu0 %v1869
      %v2005 = vpop.f32.mrb[0].mxu0
      %v2006 = vadd.f32 0.0, %v2005
      %v2007 = vpop.f32.mrb[0].mxu0
      %v2008 = vpop.f32.mrb[0].mxu0
      %v2009 = vadd.f32 0.0, %v2008
      %v2010 = vpop.f32.mrb[0].mxu0
      %2011 = vmatprep.mubr.bf16.mxu0 0
      %2012 = vmatmul.mubr.bf16.gmra.mrb[0].mxu0 %v1872
      %v2013 = vpop.f32.mrb[0].mxu0
      %v2014 = vadd.f32 0.0, %v2013
      %v2015 = vpop.f32.mrb[0].mxu0
      %v2016 = vpop.f32.mrb[0].mxu0
      %v2017 = vadd.f32 0.0, %v2016
      %v2018 = vpop.f32.mrb[0].mxu0
      %2019 = vmatprep.mubr.bf16.mxu0 0
      %2020 = vmatmul.mubr.bf16.gmra.mrb[0].mxu0 %v1875
      %v2021 = vpop.f32.mrb[0].mxu0
      %v2022 = vadd.f32 0.0, %v2021
      %v2023 = vpop.f32.mrb[0].mxu0
      %v2024 = vpop.f32.mrb[0].mxu0
      %v2025 = vadd.f32 0.0, %v2024
      %v2026 = vpop.f32.mrb[0].mxu0
      %2027 = vmatprep.mubr.bf16.mxu0 0
      %2028 = vmatmul.mubr.bf16.gmra.mrb[0].mxu0 %v1878
      %v2029 = vpop.f32.mrb[0].mxu0
      %v2030 = vadd.f32 0.0, %v2029
      %v2031 = vpop.f32.mrb[0].mxu0
      %v2032 = vpop.f32.mrb[0].mxu0
      %v2033 = vadd.f32 0.0, %v2032
      %v2034 = vpop.f32.mrb[0].mxu0
      %2035 = vmatprep.mubr.bf16.mxu0 0
      %2036 = vmatmul.mubr.bf16.gmra.mrb[0].mxu0 %v1881
      %v2037 = vpop.f32.mrb[0].mxu0
      %v2038 = vadd.f32 0.0, %v2037
      %v2039 = vpop.f32.mrb[0].mxu0
      %v2040 = vpop.f32.mrb[0].mxu0
      %v2041 = vadd.f32 0.0, %v2040
      %v2042 = vpop.f32.mrb[0].mxu0
      %2043 = vdwg.mxu0
      %v2044 = vpack.c.bf16 %v1921, %v1918
      %v2045 = vpack.c.bf16 %v1929, %v1926
      %v2046 = vpack.c.bf16 %v1937, %v1934
      %v2047 = vpack.c.bf16 %v1945, %v1942
      %v2048 = vpack.c.bf16 %v1953, %v1950
      %v2049 = vpack.c.bf16 %v1961, %v1958
      %v2050 = vpack.c.bf16 %v1969, %v1966
      %v2051 = vpack.c.bf16 %v1977, %v1974
      %v2052 = vpack.c.bf16 %v1985, %v1982
      %v2053 = vpack.c.bf16 %v1993, %v1990
      %v2054 = vpack.c.bf16 %v2001, %v1998
      %v2055 = vpack.c.bf16 %v2009, %v2006
      %v2056 = vpack.c.bf16 %v2017, %v2014
      %v2057 = vpack.c.bf16 %v2025, %v2022
      %v2058 = vpack.c.bf16 %v2033, %v2030
      %v2059 = vpack.c.bf16 %v2041, %v2038
      %s2060 = scalar_lea.vmem %s3, 3
      %v2061 = vld [vmem:[%s2060] sm:$0x1]
      %v2063 = vlaneseq
      %v2064 = vshrl.u32 %v2063, 7
      %v2065 = vsub.s32 0, %v2064
      %v2066 = vrot.slane %v2061, %v2065
      %2068 = vmatprep.subr.bf16.mxu0 0
      %2069 = vmatpush1.bf16.msra.mxu0 %v2044
      %2070 = vmatprep.subr.bf16.mxu0 0
      %2071 = vmatpush1.bf16.msra.mxu0 %v2045
      %2072 = vmatprep.subr.bf16.mxu0 0
      %2073 = vmatpush1.bf16.msra.mxu0 %v2046
      %2074 = vmatprep.subr.bf16.mxu0 0
      %2075 = vmatpush1.bf16.msra.mxu0 %v2047
      %2076 = vmatprep.subr.bf16.mxu0 0
      %2077 = vmatpush1.bf16.msra.mxu0 %v2048
      %2078 = vmatprep.subr.bf16.mxu0 0
      %2079 = vmatpush1.bf16.msra.mxu0 %v2049
      %2080 = vmatprep.subr.bf16.mxu0 0
      %2081 = vmatpush1.bf16.msra.mxu0 %v2050
      %2082 = vmatprep.subr.bf16.mxu0 0
      %2083 = vmatpush1.bf16.msra.mxu0 %v2051
      %2084 = vmatprep.subr.bf16.mxu0 0
      %2085 = vmatpush1.bf16.msra.mxu0 %v2052
      %2086 = vmatprep.subr.bf16.mxu0 0
      %2087 = vmatpush1.bf16.msra.mxu0 %v2053
      %2088 = vmatprep.subr.bf16.mxu0 0
      %2089 = vmatpush1.bf16.msra.mxu0 %v2054
      %2090 = vmatprep.subr.bf16.mxu0 0
      %2091 = vmatpush1.bf16.msra.mxu0 %v2055
      %2092 = vmatprep.subr.bf16.mxu0 0
      %2093 = vmatpush1.bf16.msra.mxu0 %v2056
      %2094 = vmatprep.subr.bf16.mxu0 0
      %2095 = vmatpush1.bf16.msra.mxu0 %v2057
      %2096 = vmatprep.subr.bf16.mxu0 0
      %2097 = vmatpush1.bf16.msra.mxu0 %v2058
      %2098 = vmatprep.subr.bf16.mxu0 0
      %2099 = vmatpush1.bf16.msra.mxu0 %v2059
      %2100 = vmatprep.mubr.bf16.mxu0 %v628
      %2101 = vmatmul.mubr.bf16.gmra.mrb[0].mxu0 %v627
      %v2102 = vpop.f32.mrb[0].mxu0
      %v2103 = vadd.f32 %v2066, %v2102
      %v2104 = vpop.f32.mrb[0].mxu0
      %v2105 = vpop.f32.mrb[0].mxu0
      %v2106 = vadd.f32 %v2066, %v2105
      %v2107 = vpop.f32.mrb[0].mxu0
      %2108 = vmatprep.mubr.bf16.mxu0 %v630
      %2109 = vmatmul.mubr.bf16.gmra.mrb[0].mxu0 %v629
      %v2110 = vpop.f32.mrb[0].mxu0
      %v2111 = vadd.f32 %v2066, %v2110
      %v2112 = vpop.f32.mrb[0].mxu0
      %v2113 = vpop.f32.mrb[0].mxu0
      %v2114 = vadd.f32 %v2066, %v2113
      %v2115 = vpop.f32.mrb[0].mxu0
      %2116 = vmatprep.mubr.bf16.mxu0 %v632
      %2117 = vmatmul.mubr.bf16.gmra.mrb[0].mxu0 %v631
      %v2118 = vpop.f32.mrb[0].mxu0
      %v2119 = vadd.f32 %v2066, %v2118
      %v2120 = vpop.f32.mrb[0].mxu0
      %v2121 = vpop.f32.mrb[0].mxu0
      %v2122 = vadd.f32 %v2066, %v2121
      %v2123 = vpop.f32.mrb[0].mxu0
      %2124 = vmatprep.mubr.bf16.mxu0 %v634
      %2125 = vmatmul.mubr.bf16.gmra.mrb[0].mxu0 %v633
      %v2126 = vpop.f32.mrb[0].mxu0
      %v2127 = vadd.f32 %v2066, %v2126
      %v2128 = vpop.f32.mrb[0].mxu0
      %v2129 = vpop.f32.mrb[0].mxu0
      %v2130 = vadd.f32 %v2066, %v2129
      %v2131 = vpop.f32.mrb[0].mxu0
      %2132 = vmatprep.mubr.bf16.mxu0 %v636
      %2133 = vmatmul.mubr.bf16.gmra.mrb[0].mxu0 %v635
      %v2134 = vpop.f32.mrb[0].mxu0
      %v2135 = vadd.f32 %v2066, %v2134
      %v2136 = vpop.f32.mrb[0].mxu0
      %v2137 = vpop.f32.mrb[0].mxu0
      %v2138 = vadd.f32 %v2066, %v2137
      %v2139 = vpop.f32.mrb[0].mxu0
      %2140 = vmatprep.mubr.bf16.mxu0 %v638
      %2141 = vmatmul.mubr.bf16.gmra.mrb[0].mxu0 %v637
      %v2142 = vpop.f32.mrb[0].mxu0
      %v2143 = vadd.f32 %v2066, %v2142
      %v2144 = vpop.f32.mrb[0].mxu0
      %v2145 = vpop.f32.mrb[0].mxu0
      %v2146 = vadd.f32 %v2066, %v2145
      %v2147 = vpop.f32.mrb[0].mxu0
      %2148 = vmatprep.mubr.bf16.mxu0 %v640
      %2149 = vmatmul.mubr.bf16.gmra.mrb[0].mxu0 %v639
      %v2150 = vpop.f32.mrb[0].mxu0
      %v2151 = vadd.f32 %v2066, %v2150
      %v2152 = vpop.f32.mrb[0].mxu0
      %v2153 = vpop.f32.mrb[0].mxu0
      %v2154 = vadd.f32 %v2066, %v2153
      %v2155 = vpop.f32.mrb[0].mxu0
      %2156 = vmatprep.mubr.bf16.mxu0 %v642
      %2157 = vmatmul.mubr.bf16.gmra.mrb[0].mxu0 %v641
      %v2158 = vpop.f32.mrb[0].mxu0
      %v2159 = vadd.f32 %v2066, %v2158
      %v2160 = vpop.f32.mrb[0].mxu0
      %v2161 = vpop.f32.mrb[0].mxu0
      %v2162 = vadd.f32 %v2066, %v2161
      %v2163 = vpop.f32.mrb[0].mxu0
      %2164 = vmatprep.mubr.bf16.mxu0 %v644
      %2165 = vmatmul.mubr.bf16.gmra.mrb[0].mxu0 %v643
      %v2166 = vpop.f32.mrb[0].mxu0
      %v2167 = vadd.f32 %v2066, %v2166
      %v2168 = vpop.f32.mrb[0].mxu0
      %v2169 = vpop.f32.mrb[0].mxu0
      %v2170 = vadd.f32 %v2066, %v2169
      %v2171 = vpop.f32.mrb[0].mxu0
      %2172 = vmatprep.mubr.bf16.mxu0 %v646
      %2173 = vmatmul.mubr.bf16.gmra.mrb[0].mxu0 %v645
      %v2174 = vpop.f32.mrb[0].mxu0
      %v2175 = vadd.f32 %v2066, %v2174
      %v2176 = vpop.f32.mrb[0].mxu0
      %v2177 = vpop.f32.mrb[0].mxu0
      %v2178 = vadd.f32 %v2066, %v2177
      %v2179 = vpop.f32.mrb[0].mxu0
      %2180 = vmatprep.mubr.bf16.mxu0 %v648
      %2181 = vmatmul.mubr.bf16.gmra.mrb[0].mxu0 %v647
      %v2182 = vpop.f32.mrb[0].mxu0
      %v2183 = vadd.f32 %v2066, %v2182
      %v2184 = vpop.f32.mrb[0].mxu0
      %v2185 = vpop.f32.mrb[0].mxu0
      %v2186 = vadd.f32 %v2066, %v2185
      %v2187 = vpop.f32.mrb[0].mxu0
      %2188 = vmatprep.mubr.bf16.mxu0 %v650
      %2189 = vmatmul.mubr.bf16.gmra.mrb[0].mxu0 %v649
      %v2190 = vpop.f32.mrb[0].mxu0
      %v2191 = vadd.f32 %v2066, %v2190
      %v2192 = vpop.f32.mrb[0].mxu0
      %v2193 = vpop.f32.mrb[0].mxu0
      %v2194 = vadd.f32 %v2066, %v2193
      %v2195 = vpop.f32.mrb[0].mxu0
      %2196 = vmatprep.mubr.bf16.mxu0 %v652
      %2197 = vmatmul.mubr.bf16.gmra.mrb[0].mxu0 %v651
      %v2198 = vpop.f32.mrb[0].mxu0
      %v2199 = vadd.f32 %v2066, %v2198
      %v2200 = vpop.f32.mrb[0].mxu0
      %v2201 = vpop.f32.mrb[0].mxu0
      %v2202 = vadd.f32 %v2066, %v2201
      %v2203 = vpop.f32.mrb[0].mxu0
      %2204 = vmatprep.mubr.bf16.mxu0 %v654
      %2205 = vmatmul.mubr.bf16.gmra.mrb[0].mxu0 %v653
      %v2206 = vpop.f32.mrb[0].mxu0
      %v2207 = vadd.f32 %v2066, %v2206
      %v2208 = vpop.f32.mrb[0].mxu0
      %v2209 = vpop.f32.mrb[0].mxu0
      %v2210 = vadd.f32 %v2066, %v2209
      %v2211 = vpop.f32.mrb[0].mxu0
      %2212 = vmatprep.mubr.bf16.mxu0 %v656
      %2213 = vmatmul.mubr.bf16.gmra.mrb[0].mxu0 %v655
      %v2214 = vpop.f32.mrb[0].mxu0
      %v2215 = vadd.f32 %v2066, %v2214
      %v2216 = vpop.f32.mrb[0].mxu0
      %v2217 = vpop.f32.mrb[0].mxu0
      %v2218 = vadd.f32 %v2066, %v2217
      %v2219 = vpop.f32.mrb[0].mxu0
      %2220 = vmatprep.mubr.bf16.mxu0 %v658
      %2221 = vmatmul.mubr.bf16.gmra.mrb[0].mxu0 %v657
      %v2222 = vpop.f32.mrb[0].mxu0
      %v2223 = vadd.f32 %v2066, %v2222
      %v2224 = vpop.f32.mrb[0].mxu0
      %v2225 = vpop.f32.mrb[0].mxu0
      %v2226 = vadd.f32 %v2066, %v2225
      %v2227 = vpop.f32.mrb[0].mxu0
      %2228 = vdwg.mxu0
      %v2229 = vmax.f32 %v2103, 0.0
      %v2230 = vmax.f32 %v2106, 0.0
      %v2231 = vmax.f32 %v2111, 0.0
      %v2232 = vmax.f32 %v2114, 0.0
      %v2233 = vmax.f32 %v2119, 0.0
      %v2234 = vmax.f32 %v2122, 0.0
      %v2235 = vmax.f32 %v2127, 0.0
      %v2236 = vmax.f32 %v2130, 0.0
      %v2237 = vmax.f32 %v2135, 0.0
      %v2238 = vmax.f32 %v2138, 0.0
      %v2239 = vmax.f32 %v2143, 0.0
      %v2240 = vmax.f32 %v2146, 0.0
      %v2241 = vmax.f32 %v2151, 0.0
      %v2242 = vmax.f32 %v2154, 0.0
      %v2243 = vmax.f32 %v2159, 0.0
      %v2244 = vmax.f32 %v2162, 0.0
      %v2245 = vmax.f32 %v2167, 0.0
      %v2246 = vmax.f32 %v2170, 0.0
      %v2247 = vmax.f32 %v2175, 0.0
      %v2248 = vmax.f32 %v2178, 0.0
      %v2249 = vmax.f32 %v2183, 0.0
      %v2250 = vmax.f32 %v2186, 0.0
      %v2251 = vmax.f32 %v2191, 0.0
      %v2252 = vmax.f32 %v2194, 0.0
      %v2253 = vmax.f32 %v2199, 0.0
      %v2254 = vmax.f32 %v2202, 0.0
      %v2255 = vmax.f32 %v2207, 0.0
      %v2256 = vmax.f32 %v2210, 0.0
      %v2257 = vmax.f32 %v2215, 0.0
      %v2258 = vmax.f32 %v2218, 0.0
      %v2259 = vmax.f32 %v2223, 0.0
      %v2260 = vmax.f32 %v2226, 0.0
      %v2261 = vpack.c.bf16 %v2230, %v2229
      %v2262 = vpack.c.bf16 %v2232, %v2231
      %v2263 = vpack.c.bf16 %v2234, %v2233
      %v2264 = vpack.c.bf16 %v2236, %v2235
      %v2265 = vpack.c.bf16 %v2238, %v2237
      %v2266 = vpack.c.bf16 %v2240, %v2239
      %v2267 = vpack.c.bf16 %v2242, %v2241
      %v2268 = vpack.c.bf16 %v2244, %v2243
      %v2269 = vpack.c.bf16 %v2246, %v2245
      %v2270 = vpack.c.bf16 %v2248, %v2247
      %v2271 = vpack.c.bf16 %v2250, %v2249
      %v2272 = vpack.c.bf16 %v2252, %v2251
      %v2273 = vpack.c.bf16 %v2254, %v2253
      %v2274 = vpack.c.bf16 %v2256, %v2255
      %v2275 = vpack.c.bf16 %v2258, %v2257
      %v2276 = vpack.c.bf16 %v2260, %v2259
      %s2277 = scalar_lea.vmem %s2, 64
      %v2278 = vld [vmem:[%s2277] sm:$0xf]
      %v2279 = vld [vmem:[%s2277 + $0x4] sm:$0xf]
      %v2280 = vld [vmem:[%s2277 + $0x8] sm:$0xf]
      %v2281 = vld [vmem:[%s2277 + $0xc] sm:$0xf]
      %v2286 = vunpack.c.l.b16 %v2278
      %v2287 = vunpack.c.l.b16 %v2279
      %v2288 = vunpack.c.l.b16 %v2280
      %v2289 = vunpack.c.l.b16 %v2281
      %v2290 = vpack.c.b16 %v2287, %v2286
      %v2291 = vpack.c.b16 %v2289, %v2288
      %v2295 = vsel %vm298, %v2261, 0
      %v2298 = vsel %vm298, %v2262, 0
      %v2301 = vsel %vm298, %v2263, 0
      %v2304 = vsel %vm298, %v2264, 0
      %v2307 = vsel %vm298, %v2265, 0
      %v2310 = vsel %vm298, %v2266, 0
      %v2313 = vsel %vm298, %v2267, 0
      %v2316 = vsel %vm298, %v2268, 0
      %v2319 = vsel %vm298, %v2269, 0
      %v2322 = vsel %vm298, %v2270, 0
      %v2325 = vsel %vm298, %v2271, 0
      %v2328 = vsel %vm298, %v2272, 0
      %v2331 = vsel %vm298, %v2273, 0
      %v2334 = vsel %vm298, %v2274, 0
      %v2337 = vsel %vm298, %v2275, 0
      %v2340 = vsel %vm298, %v2276, 0
      %2342 = vmatprep.subr.bf16.mxu0 0
      %2343 = vmatpush1.bf16.msra.mxu0 %v2290
      %2344 = vmatprep.subr.bf16.mxu0 0
      %2345 = vmatpush1.bf16.msra.mxu0 %v2291
      %2346 = vmatprep.subr.bf16.mxu0 0
      %2347 = vmatpush1.bf16.msra.mxu0 0
      %2348 = vmatprep.subr.bf16.mxu0 0
      %2349 = vmatpush1.bf16.msra.mxu0 0
      %2350 = vmatprep.subr.bf16.mxu0 0
      %2351 = vmatpush1.bf16.msra.mxu0 0
      %2352 = vmatprep.subr.bf16.mxu0 0
      %2353 = vmatpush1.bf16.msra.mxu0 0
      %2354 = vmatprep.subr.bf16.mxu0 0
      %2355 = vmatpush1.bf16.msra.mxu0 0
      %2356 = vmatprep.subr.bf16.mxu0 0
      %2357 = vmatpush1.bf16.msra.mxu0 0
      %2358 = vmatprep.subr.bf16.mxu0 0
      %2359 = vmatpush1.bf16.msra.mxu0 0
      %2360 = vmatprep.subr.bf16.mxu0 0
      %2361 = vmatpush1.bf16.msra.mxu0 0
      %2362 = vmatprep.subr.bf16.mxu0 0
      %2363 = vmatpush1.bf16.msra.mxu0 0
      %2364 = vmatprep.subr.bf16.mxu0 0
      %2365 = vmatpush1.bf16.msra.mxu0 0
      %2366 = vmatprep.subr.bf16.mxu0 0
      %2367 = vmatpush1.bf16.msra.mxu0 0
      %2368 = vmatprep.subr.bf16.mxu0 0
      %2369 = vmatpush1.bf16.msra.mxu0 0
      %2370 = vmatprep.subr.bf16.mxu0 0
      %2371 = vmatpush1.bf16.msra.mxu0 0
      %2372 = vmatprep.subr.bf16.mxu0 0
      %2373 = vmatpush1.bf16.msra.mxu0 0
      %2374 = vmatprep.mubr.bf16.mxu0 0
      %2375 = vmatmul.mubr.bf16.gmra.mrb[0].mxu0 %v2295
      %v2376 = vpop.f32.mrb[0].mxu0
      %v2377 = vadd.f32 0.0, %v2376
      %v2378 = vpop.f32.mrb[0].mxu0
      %v2379 = vpop.f32.mrb[0].mxu0
      %v2380 = vadd.f32 0.0, %v2379
      %v2381 = vpop.f32.mrb[0].mxu0
      %2382 = vmatprep.mubr.bf16.mxu0 0
      %2383 = vmatmul.mubr.bf16.gmra.mrb[0].mxu0 %v2298
      %v2384 = vpop.f32.mrb[0].mxu0
      %v2385 = vadd.f32 0.0, %v2384
      %v2386 = vpop.f32.mrb[0].mxu0
      %v2387 = vpop.f32.mrb[0].mxu0
      %v2388 = vadd.f32 0.0, %v2387
      %v2389 = vpop.f32.mrb[0].mxu0
      %2390 = vmatprep.mubr.bf16.mxu0 0
      %2391 = vmatmul.mubr.bf16.gmra.mrb[0].mxu0 %v2301
      %v2392 = vpop.f32.mrb[0].mxu0
      %v2393 = vadd.f32 0.0, %v2392
      %v2394 = vpop.f32.mrb[0].mxu0
      %v2395 = vpop.f32.mrb[0].mxu0
      %v2396 = vadd.f32 0.0, %v2395
      %v2397 = vpop.f32.mrb[0].mxu0
      %2398 = vmatprep.mubr.bf16.mxu0 0
      %2399 = vmatmul.mubr.bf16.gmra.mrb[0].mxu0 %v2304
      %v2400 = vpop.f32.mrb[0].mxu0
      %v2401 = vadd.f32 0.0, %v2400
      %v2402 = vpop.f32.mrb[0].mxu0
      %v2403 = vpop.f32.mrb[0].mxu0
      %v2404 = vadd.f32 0.0, %v2403
      %v2405 = vpop.f32.mrb[0].mxu0
      %2406 = vmatprep.mubr.bf16.mxu0 0
      %2407 = vmatmul.mubr.bf16.gmra.mrb[0].mxu0 %v2307
      %v2408 = vpop.f32.mrb[0].mxu0
      %v2409 = vadd.f32 0.0, %v2408
      %v2410 = vpop.f32.mrb[0].mxu0
      %v2411 = vpop.f32.mrb[0].mxu0
      %v2412 = vadd.f32 0.0, %v2411
      %v2413 = vpop.f32.mrb[0].mxu0
      %2414 = vmatprep.mubr.bf16.mxu0 0
      %2415 = vmatmul.mubr.bf16.gmra.mrb[0].mxu0 %v2310
      %v2416 = vpop.f32.mrb[0].mxu0
      %v2417 = vadd.f32 0.0, %v2416
      %v2418 = vpop.f32.mrb[0].mxu0
      %v2419 = vpop.f32.mrb[0].mxu0
      %v2420 = vadd.f32 0.0, %v2419
      %v2421 = vpop.f32.mrb[0].mxu0
      %2422 = vmatprep.mubr.bf16.mxu0 0
      %2423 = vmatmul.mubr.bf16.gmra.mrb[0].mxu0 %v2313
      %v2424 = vpop.f32.mrb[0].mxu0
      %v2425 = vadd.f32 0.0, %v2424
      %v2426 = vpop.f32.mrb[0].mxu0
      %v2427 = vpop.f32.mrb[0].mxu0
      %v2428 = vadd.f32 0.0, %v2427
      %v2429 = vpop.f32.mrb[0].mxu0
      %2430 = vmatprep.mubr.bf16.mxu0 0
      %2431 = vmatmul.mubr.bf16.gmra.mrb[0].mxu0 %v2316
      %v2432 = vpop.f32.mrb[0].mxu0
      %v2433 = vadd.f32 0.0, %v2432
      %v2434 = vpop.f32.mrb[0].mxu0
      %v2435 = vpop.f32.mrb[0].mxu0
      %v2436 = vadd.f32 0.0, %v2435
      %v2437 = vpop.f32.mrb[0].mxu0
      %2438 = vmatprep.mubr.bf16.mxu0 0
      %2439 = vmatmul.mubr.bf16.gmra.mrb[0].mxu0 %v2319
      %v2440 = vpop.f32.mrb[0].mxu0
      %v2441 = vadd.f32 0.0, %v2440
      %v2442 = vpop.f32.mrb[0].mxu0
      %v2443 = vpop.f32.mrb[0].mxu0
      %v2444 = vadd.f32 0.0, %v2443
      %v2445 = vpop.f32.mrb[0].mxu0
      %2446 = vmatprep.mubr.bf16.mxu0 0
      %2447 = vmatmul.mubr.bf16.gmra.mrb[0].mxu0 %v2322
      %v2448 = vpop.f32.mrb[0].mxu0
      %v2449 = vadd.f32 0.0, %v2448
      %v2450 = vpop.f32.mrb[0].mxu0
      %v2451 = vpop.f32.mrb[0].mxu0
      %v2452 = vadd.f32 0.0, %v2451
      %v2453 = vpop.f32.mrb[0].mxu0
      %2454 = vmatprep.mubr.bf16.mxu0 0
      %2455 = vmatmul.mubr.bf16.gmra.mrb[0].mxu0 %v2325
      %v2456 = vpop.f32.mrb[0].mxu0
      %v2457 = vadd.f32 0.0, %v2456
      %v2458 = vpop.f32.mrb[0].mxu0
      %v2459 = vpop.f32.mrb[0].mxu0
      %v2460 = vadd.f32 0.0, %v2459
      %v2461 = vpop.f32.mrb[0].mxu0
      %2462 = vmatprep.mubr.bf16.mxu0 0
      %2463 = vmatmul.mubr.bf16.gmra.mrb[0].mxu0 %v2328
      %v2464 = vpop.f32.mrb[0].mxu0
      %v2465 = vadd.f32 0.0, %v2464
      %v2466 = vpop.f32.mrb[0].mxu0
      %v2467 = vpop.f32.mrb[0].mxu0
      %v2468 = vadd.f32 0.0, %v2467
      %v2469 = vpop.f32.mrb[0].mxu0
      %2470 = vmatprep.mubr.bf16.mxu0 0
      %2471 = vmatmul.mubr.bf16.gmra.mrb[0].mxu0 %v2331
      %v2472 = vpop.f32.mrb[0].mxu0
      %v2473 = vadd.f32 0.0, %v2472
      %v2474 = vpop.f32.mrb[0].mxu0
      %v2475 = vpop.f32.mrb[0].mxu0
      %v2476 = vadd.f32 0.0, %v2475
      %v2477 = vpop.f32.mrb[0].mxu0
      %2478 = vmatprep.mubr.bf16.mxu0 0
      %2479 = vmatmul.mubr.bf16.gmra.mrb[0].mxu0 %v2334
      %v2480 = vpop.f32.mrb[0].mxu0
      %v2481 = vadd.f32 0.0, %v2480
      %v2482 = vpop.f32.mrb[0].mxu0
      %v2483 = vpop.f32.mrb[0].mxu0
      %v2484 = vadd.f32 0.0, %v2483
      %v2485 = vpop.f32.mrb[0].mxu0
      %2486 = vmatprep.mubr.bf16.mxu0 0
      %2487 = vmatmul.mubr.bf16.gmra.mrb[0].mxu0 %v2337
      %v2488 = vpop.f32.mrb[0].mxu0
      %v2489 = vadd.f32 0.0, %v2488
      %v2490 = vpop.f32.mrb[0].mxu0
      %v2491 = vpop.f32.mrb[0].mxu0
      %v2492 = vadd.f32 0.0, %v2491
      %v2493 = vpop.f32.mrb[0].mxu0
      %2494 = vmatprep.mubr.bf16.mxu0 0
      %2495 = vmatmul.mubr.bf16.gmra.mrb[0].mxu0 %v2340
      %v2496 = vpop.f32.mrb[0].mxu0
      %v2497 = vadd.f32 0.0, %v2496
      %v2498 = vpop.f32.mrb[0].mxu0
      %v2499 = vpop.f32.mrb[0].mxu0
      %v2500 = vadd.f32 0.0, %v2499
      %v2501 = vpop.f32.mrb[0].mxu0
      %2502 = vdwg.mxu0
      %v2503 = vpack.c.bf16 %v2380, %v2377
      %v2504 = vpack.c.bf16 %v2388, %v2385
      %v2505 = vpack.c.bf16 %v2396, %v2393
      %v2506 = vpack.c.bf16 %v2404, %v2401
      %v2507 = vpack.c.bf16 %v2412, %v2409
      %v2508 = vpack.c.bf16 %v2420, %v2417
      %v2509 = vpack.c.bf16 %v2428, %v2425
      %v2510 = vpack.c.bf16 %v2436, %v2433
      %v2511 = vpack.c.bf16 %v2444, %v2441
      %v2512 = vpack.c.bf16 %v2452, %v2449
      %v2513 = vpack.c.bf16 %v2460, %v2457
      %v2514 = vpack.c.bf16 %v2468, %v2465
      %v2515 = vpack.c.bf16 %v2476, %v2473
      %v2516 = vpack.c.bf16 %v2484, %v2481
      %v2517 = vpack.c.bf16 %v2492, %v2489
      %v2518 = vpack.c.bf16 %v2500, %v2497
      %s2519 = scalar_lea.vmem %s3, 4
      %v2520 = vld [vmem:[%s2519] sm:$0x1]
      %v2522 = vlaneseq
      %v2523 = vshrl.u32 %v2522, 7
      %v2524 = vsub.s32 0, %v2523
      %v2525 = vrot.slane %v2520, %v2524
      %2527 = vmatprep.subr.bf16.mxu0 0
      %2528 = vmatpush1.bf16.msra.mxu0 %v2503
      %2529 = vmatprep.subr.bf16.mxu0 0
      %2530 = vmatpush1.bf16.msra.mxu0 %v2504
      %2531 = vmatprep.subr.bf16.mxu0 0
      %2532 = vmatpush1.bf16.msra.mxu0 %v2505
      %2533 = vmatprep.subr.bf16.mxu0 0
      %2534 = vmatpush1.bf16.msra.mxu0 %v2506
      %2535 = vmatprep.subr.bf16.mxu0 0
      %2536 = vmatpush1.bf16.msra.mxu0 %v2507
      %2537 = vmatprep.subr.bf16.mxu0 0
      %2538 = vmatpush1.bf16.msra.mxu0 %v2508
      %2539 = vmatprep.subr.bf16.mxu0 0
      %2540 = vmatpush1.bf16.msra.mxu0 %v2509
      %2541 = vmatprep.subr.bf16.mxu0 0
      %2542 = vmatpush1.bf16.msra.mxu0 %v2510
      %2543 = vmatprep.subr.bf16.mxu0 0
      %2544 = vmatpush1.bf16.msra.mxu0 %v2511
      %2545 = vmatprep.subr.bf16.mxu0 0
      %2546 = vmatpush1.bf16.msra.mxu0 %v2512
      %2547 = vmatprep.subr.bf16.mxu0 0
      %2548 = vmatpush1.bf16.msra.mxu0 %v2513
      %2549 = vmatprep.subr.bf16.mxu0 0
      %2550 = vmatpush1.bf16.msra.mxu0 %v2514
      %2551 = vmatprep.subr.bf16.mxu0 0
      %2552 = vmatpush1.bf16.msra.mxu0 %v2515
      %2553 = vmatprep.subr.bf16.mxu0 0
      %2554 = vmatpush1.bf16.msra.mxu0 %v2516
      %2555 = vmatprep.subr.bf16.mxu0 0
      %2556 = vmatpush1.bf16.msra.mxu0 %v2517
      %2557 = vmatprep.subr.bf16.mxu0 0
      %2558 = vmatpush1.bf16.msra.mxu0 %v2518
      %2559 = vmatprep.mubr.bf16.mxu0 %v628
      %2560 = vmatmul.mubr.bf16.gmra.mrb[0].mxu0 %v627
      %v2561 = vpop.f32.mrb[0].mxu0
      %v2562 = vadd.f32 %v2525, %v2561
      %v2563 = vpop.f32.mrb[0].mxu0
      %v2564 = vpop.f32.mrb[0].mxu0
      %v2565 = vadd.f32 %v2525, %v2564
      %v2566 = vpop.f32.mrb[0].mxu0
      %2567 = vmatprep.mubr.bf16.mxu0 %v630
      %2568 = vmatmul.mubr.bf16.gmra.mrb[0].mxu0 %v629
      %v2569 = vpop.f32.mrb[0].mxu0
      %v2570 = vadd.f32 %v2525, %v2569
      %v2571 = vpop.f32.mrb[0].mxu0
      %v2572 = vpop.f32.mrb[0].mxu0
      %v2573 = vadd.f32 %v2525, %v2572
      %v2574 = vpop.f32.mrb[0].mxu0
      %2575 = vmatprep.mubr.bf16.mxu0 %v632
      %2576 = vmatmul.mubr.bf16.gmra.mrb[0].mxu0 %v631
      %v2577 = vpop.f32.mrb[0].mxu0
      %v2578 = vadd.f32 %v2525, %v2577
      %v2579 = vpop.f32.mrb[0].mxu0
      %v2580 = vpop.f32.mrb[0].mxu0
      %v2581 = vadd.f32 %v2525, %v2580
      %v2582 = vpop.f32.mrb[0].mxu0
      %2583 = vmatprep.mubr.bf16.mxu0 %v634
      %2584 = vmatmul.mubr.bf16.gmra.mrb[0].mxu0 %v633
      %v2585 = vpop.f32.mrb[0].mxu0
      %v2586 = vadd.f32 %v2525, %v2585
      %v2587 = vpop.f32.mrb[0].mxu0
      %v2588 = vpop.f32.mrb[0].mxu0
      %v2589 = vadd.f32 %v2525, %v2588
      %v2590 = vpop.f32.mrb[0].mxu0
      %2591 = vmatprep.mubr.bf16.mxu0 %v636
      %2592 = vmatmul.mubr.bf16.gmra.mrb[0].mxu0 %v635
      %v2593 = vpop.f32.mrb[0].mxu0
      %v2594 = vadd.f32 %v2525, %v2593
      %v2595 = vpop.f32.mrb[0].mxu0
      %v2596 = vpop.f32.mrb[0].mxu0
      %v2597 = vadd.f32 %v2525, %v2596
      %v2598 = vpop.f32.mrb[0].mxu0
      %2599 = vmatprep.mubr.bf16.mxu0 %v638
      %2600 = vmatmul.mubr.bf16.gmra.mrb[0].mxu0 %v637
      %v2601 = vpop.f32.mrb[0].mxu0
      %v2602 = vadd.f32 %v2525, %v2601
      %v2603 = vpop.f32.mrb[0].mxu0
      %v2604 = vpop.f32.mrb[0].mxu0
      %v2605 = vadd.f32 %v2525, %v2604
      %v2606 = vpop.f32.mrb[0].mxu0
      %2607 = vmatprep.mubr.bf16.mxu0 %v640
      %2608 = vmatmul.mubr.bf16.gmra.mrb[0].mxu0 %v639
      %v2609 = vpop.f32.mrb[0].mxu0
      %v2610 = vadd.f32 %v2525, %v2609
      %v2611 = vpop.f32.mrb[0].mxu0
      %v2612 = vpop.f32.mrb[0].mxu0
      %v2613 = vadd.f32 %v2525, %v2612
      %v2614 = vpop.f32.mrb[0].mxu0
      %2615 = vmatprep.mubr.bf16.mxu0 %v642
      %2616 = vmatmul.mubr.bf16.gmra.mrb[0].mxu0 %v641
      %v2617 = vpop.f32.mrb[0].mxu0
      %v2618 = vadd.f32 %v2525, %v2617
      %v2619 = vpop.f32.mrb[0].mxu0
      %v2620 = vpop.f32.mrb[0].mxu0
      %v2621 = vadd.f32 %v2525, %v2620
      %v2622 = vpop.f32.mrb[0].mxu0
      %2623 = vmatprep.mubr.bf16.mxu0 %v644
      %2624 = vmatmul.mubr.bf16.gmra.mrb[0].mxu0 %v643
      %v2625 = vpop.f32.mrb[0].mxu0
      %v2626 = vadd.f32 %v2525, %v2625
      %v2627 = vpop.f32.mrb[0].mxu0
      %v2628 = vpop.f32.mrb[0].mxu0
      %v2629 = vadd.f32 %v2525, %v2628
      %v2630 = vpop.f32.mrb[0].mxu0
      %2631 = vmatprep.mubr.bf16.mxu0 %v646
      %2632 = vmatmul.mubr.bf16.gmra.mrb[0].mxu0 %v645
      %v2633 = vpop.f32.mrb[0].mxu0
      %v2634 = vadd.f32 %v2525, %v2633
      %v2635 = vpop.f32.mrb[0].mxu0
      %v2636 = vpop.f32.mrb[0].mxu0
      %v2637 = vadd.f32 %v2525, %v2636
      %v2638 = vpop.f32.mrb[0].mxu0
      %2639 = vmatprep.mubr.bf16.mxu0 %v648
      %2640 = vmatmul.mubr.bf16.gmra.mrb[0].mxu0 %v647
      %v2641 = vpop.f32.mrb[0].mxu0
      %v2642 = vadd.f32 %v2525, %v2641
      %v2643 = vpop.f32.mrb[0].mxu0
      %v2644 = vpop.f32.mrb[0].mxu0
      %v2645 = vadd.f32 %v2525, %v2644
      %v2646 = vpop.f32.mrb[0].mxu0
      %2647 = vmatprep.mubr.bf16.mxu0 %v650
      %2648 = vmatmul.mubr.bf16.gmra.mrb[0].mxu0 %v649
      %v2649 = vpop.f32.mrb[0].mxu0
      %v2650 = vadd.f32 %v2525, %v2649
      %v2651 = vpop.f32.mrb[0].mxu0
      %v2652 = vpop.f32.mrb[0].mxu0
      %v2653 = vadd.f32 %v2525, %v2652
      %v2654 = vpop.f32.mrb[0].mxu0
      %2655 = vmatprep.mubr.bf16.mxu0 %v652
      %2656 = vmatmul.mubr.bf16.gmra.mrb[0].mxu0 %v651
      %v2657 = vpop.f32.mrb[0].mxu0
      %v2658 = vadd.f32 %v2525, %v2657
      %v2659 = vpop.f32.mrb[0].mxu0
      %v2660 = vpop.f32.mrb[0].mxu0
      %v2661 = vadd.f32 %v2525, %v2660
      %v2662 = vpop.f32.mrb[0].mxu0
      %2663 = vmatprep.mubr.bf16.mxu0 %v654
      %2664 = vmatmul.mubr.bf16.gmra.mrb[0].mxu0 %v653
      %v2665 = vpop.f32.mrb[0].mxu0
      %v2666 = vadd.f32 %v2525, %v2665
      %v2667 = vpop.f32.mrb[0].mxu0
      %v2668 = vpop.f32.mrb[0].mxu0
      %v2669 = vadd.f32 %v2525, %v2668
      %v2670 = vpop.f32.mrb[0].mxu0
      %2671 = vmatprep.mubr.bf16.mxu0 %v656
      %2672 = vmatmul.mubr.bf16.gmra.mrb[0].mxu0 %v655
      %v2673 = vpop.f32.mrb[0].mxu0
      %v2674 = vadd.f32 %v2525, %v2673
      %v2675 = vpop.f32.mrb[0].mxu0
      %v2676 = vpop.f32.mrb[0].mxu0
      %v2677 = vadd.f32 %v2525, %v2676
      %v2678 = vpop.f32.mrb[0].mxu0
      %2679 = vmatprep.mubr.bf16.mxu0 %v658
      %2680 = vmatmul.mubr.bf16.gmra.mrb[0].mxu0 %v657
      %v2681 = vpop.f32.mrb[0].mxu0
      %v2682 = vadd.f32 %v2525, %v2681
      %v2683 = vpop.f32.mrb[0].mxu0
      %v2684 = vpop.f32.mrb[0].mxu0
      %v2685 = vadd.f32 %v2525, %v2684
      %v2686 = vpop.f32.mrb[0].mxu0
      %2687 = vdwg.mxu0
      %2688 = vst.msk [vmem:[%s199] sm:$0xff] %vm298, %v2562
      %2689 = vst.msk [vmem:[%s199 + $0x8] sm:$0xff] %vm298, %v2565
      %2690 = vst.msk [vmem:[%s199 + $0x10] sm:$0xff] %vm298, %v2570
      %2691 = vst.msk [vmem:[%s199 + $0x18] sm:$0xff] %vm298, %v2573
      %2692 = vst.msk [vmem:[%s199 + $0x20] sm:$0xff] %vm298, %v2578
      %2693 = vst.msk [vmem:[%s199 + $0x28] sm:$0xff] %vm298, %v2581
      %2694 = vst.msk [vmem:[%s199 + $0x30] sm:$0xff] %vm298, %v2586
      %2695 = vst.msk [vmem:[%s199 + $0x38] sm:$0xff] %vm298, %v2589
      %2696 = vst.msk [vmem:[%s199 + $0x40] sm:$0xff] %vm298, %v2594
      %2697 = vst.msk [vmem:[%s199 + $0x48] sm:$0xff] %vm298, %v2597
      %2698 = vst.msk [vmem:[%s199 + $0x50] sm:$0xff] %vm298, %v2602
      %2699 = vst.msk [vmem:[%s199 + $0x58] sm:$0xff] %vm298, %v2605
      %2700 = vst.msk [vmem:[%s199 + $0x60] sm:$0xff] %vm298, %v2610
      %2701 = vst.msk [vmem:[%s199 + $0x68] sm:$0xff] %vm298, %v2613
      %2702 = vst.msk [vmem:[%s199 + $0x70] sm:$0xff] %vm298, %v2618
      %2703 = vst.msk [vmem:[%s199 + $0x78] sm:$0xff] %vm298, %v2621
      %2704 = vst.msk [vmem:[%s199 + $0x80] sm:$0xff] %vm298, %v2626
      %2705 = vst.msk [vmem:[%s199 + $0x88] sm:$0xff] %vm298, %v2629
      %2706 = vst.msk [vmem:[%s199 + $0x90] sm:$0xff] %vm298, %v2634
      %2707 = vst.msk [vmem:[%s199 + $0x98] sm:$0xff] %vm298, %v2637
      %2708 = vst.msk [vmem:[%s199 + $0xa0] sm:$0xff] %vm298, %v2642
      %2709 = vst.msk [vmem:[%s199 + $0xa8] sm:$0xff] %vm298, %v2645
      %2710 = vst.msk [vmem:[%s199 + $0xb0] sm:$0xff] %vm298, %v2650
      %2711 = vst.msk [vmem:[%s199 + $0xb8] sm:$0xff] %vm298, %v2653
      %2712 = vst.msk [vmem:[%s199 + $0xc0] sm:$0xff] %vm298, %v2658
      %2713 = vst.msk [vmem:[%s199 + $0xc8] sm:$0xff] %vm298, %v2661
      %2714 = vst.msk [vmem:[%s199 + $0xd0] sm:$0xff] %vm298, %v2666
      %2715 = vst.msk [vmem:[%s199 + $0xd8] sm:$0xff] %vm298, %v2669
      %2716 = vst.msk [vmem:[%s199 + $0xe0] sm:$0xff] %vm298, %v2674
      %2717 = vst.msk [vmem:[%s199 + $0xe8] sm:$0xff] %vm298, %v2677
      %2718 = vst.msk [vmem:[%s199 + $0xf0] sm:$0xff] %vm298, %v2682
      %2719 = vst.msk [vmem:[%s199 + $0xf8] sm:$0xff] %vm298, %v2685
      %s2720 = smul.u32 32, %s15
      %p2721 = scmp.lt.s32.totalorder %s2720, 63
      %s2722 = scalar_select %p2721, %s2720, 63
      %s2723 = smul.addr %s2722, 8
      %s2724 = scalar_lea.vmem %s4, %s2723
      // Predicated region
      $region37: #{gactor_forward_batched.1} parent=35 // pred_check
        %p2725 = pneg %p122
      $region38: #{gactor_forward_batched.1} parent=35 // pred_check_branch
        %2727 = sbr.rel (%p2725) target = $region40
      $region39: #{gactor_forward_batched.1} parent=35 // pred_region
        %s2728 = smul.u32 32, %s15
      $region40: #{gactor_forward_batched.1} parent=35 // pred_fallthru
        _
    $region36: #{gactor_forward_batched.1} parent=5 // pred_fallthru
      _
    %p2729 = scmp.le.s32.totalorder 2, %s10
    // Predicated region
    $region41: #{gactor_forward_batched.1} parent=5 // pred_check
      %p2730 = pneg %p2729
    $region42: #{gactor_forward_batched.1} parent=5 // pred_check_branch
      %2732 = sbr.rel (%p2730) target = $region44
    $region43: #{gactor_forward_batched.1} parent=5 // pred_region
      %s2733 = ssub.s32 %s10, 2
      // Predicated region
      $region45: #{gactor_forward_batched.1} parent=43 // pred_check
        %p2734 = pneg %p128
      $region46: #{gactor_forward_batched.1} parent=43 // pred_check_branch
        %2736 = sbr.rel (%p2734) target = $region48
      $region47: #{gactor_forward_batched.1} parent=43 // pred_region
        %s2737 = smul.u32 32, %s16
        %p2738 = scmp.lt.s32.totalorder %s2737, 63
        %s2739 = scalar_select %p2738, %s2737, 63
        %s2740 = smul.addr %s2739, 8
        %s2741 = scalar_lea.vmem %s4, %s2740
      $region48: #{gactor_forward_batched.1} parent=43 // pred_fallthru
        _
    $region44: #{gactor_forward_batched.1} parent=5 // pred_fallthru
      _
  $region6: #{gactor_forward_batched.1} parent=0 // loop_footer
    %s14 = sadd.s32 1, %s10
  $region7: #{gactor_forward_batched.1} parent=0 // loop_footer_branch
    %9 = sbr.rel target = $region3
  $region8: #{gactor_forward_batched.1} parent=0 // loop_exit
    _

</llo_original>
